<compile_context>
chip_gen: v7x
topology: tpu7x:2x2x1
jax: 0.10.0
libtpu: 0.0.40
codegen_flags: <defaults>
</compile_context>

<pallas_src>
import functools
import math

import jax
import jax.numpy as jnp
from jax.experimental import pallas as pl
from jax.experimental.pallas import tpu as pltpu


def _round_up(n, m):
    return ((n + m - 1) // m) * m


def _row_granule(dtype):
    """Sublane row granule for the second-minor dim: 8 (32-bit), 16 (16-bit), 32 (8-bit)."""
    size = jnp.dtype(dtype).itemsize
    if size >= 4:
        return 8
    if size == 2:
        return 16
    return 32


# ----------------------------------------------------------------------------
# Kernel: fused MLP forward for one (tile_m, features) batch tile.
# refs = (x_ref, w0_ref, b0_ref, w1_ref, b1_ref, ..., o_ref)
# Weights/biases are full resident (lane-padded) VMEM blocks; only the batch
# dimension is tiled by the grid.
# ----------------------------------------------------------------------------
def _mlp_kernel(*refs, n_layers, compute_dtype):
    x_ref = refs[0]
    o_ref = refs[-1]
    wb_refs = refs[1:-1]

    h = x_ref[...]                                    # already compute_dtype
    for li in range(n_layers):
        w = wb_refs[2 * li][...]                      # (in_p, out_p), compute_dtype
        b = wb_refs[2 * li + 1][...]                  # (1, out_p), f32
        # MXU matmul with f32 accumulation; same-dtype astype folds to a no-op.
        h = jnp.dot(h.astype(compute_dtype), w,
                    preferred_element_type=jnp.float32) + b
        if li != n_layers - 1:
            # tanh in compute_dtype: the cast is needed anyway for the next
            # layer's MXU operands; bf16 EUP is ~2x on v6e/v7x and halves vreg
            # pressure. (On v5e Mosaic widens internally — still correct.)
            h = jnp.tanh(h.astype(compute_dtype))
    o_ref[...] = h.astype(o_ref.dtype)                # lane-dense, unmasked store


# ----------------------------------------------------------------------------
# One-time parameter prep (hoisted out of the forward).
# ----------------------------------------------------------------------------
def prepare_mlp_params(weights, biases, *, feature_align=128,
                       compute_dtype=jnp.bfloat16):
    """Transpose to (in, out), zero-pad features to lane multiples, cast MXU
    operands to compute_dtype. Padded weight rows / bias cols are zero and
    tanh(0)=0, so padding never leaks into the real outputs.

    feature_align: 128 matches v5e's 128x128 MXU and is fine for narrow layers;
    use 256 for production-width layers on v6e/v7x (256x256 MXU)."""
    assert len(weights) == len(biases) and len(weights) >= 1
    in_dim = weights[0].shape[1]
    out_dim = weights[-1].shape[0]

    wts, bss = [], []
    for w, b in zip(weights, biases):
        fan_out, fan_in = w.shape
        fi_p = _round_up(fan_in, feature_align)
        fo_p = _round_up(fan_out, feature_align)
        w_t = jnp.asarray(w, jnp.float32).T                       # (in, out)
        w_pad = jnp.zeros((fi_p, fo_p), jnp.float32).at[:fan_in, :fan_out].set(w_t)
        b_pad = jnp.zeros((1, fo_p), jnp.float32).at[0, :fan_out].set(
            jnp.asarray(b, jnp.float32))
        wts.append(w_pad.astype(compute_dtype))                   # bf16 MXU operand
        bss.append(b_pad)                                         # bias stays f32

    return dict(weights=wts, biases=bss,
                in_dim=in_dim, out_dim=out_dim,
                in_p=wts[0].shape[0], out_p=wts[-1].shape[1],
                compute_dtype=compute_dtype)


# ----------------------------------------------------------------------------
# Forward pass (only padding of x + the pallas_call happen per call).
# ----------------------------------------------------------------------------
def mlp_forward_prepared(x, prepped, *, tile_m=512, out_dtype=jnp.float32,
                         weight_buffer_count=1, min_grid_steps=2,
                         vmem_cap_bytes=48 * 1024 * 1024):
    wts, bss = prepped["weights"], prepped["biases"]
    compute_dtype = prepped["compute_dtype"]
    in_dim, out_dim = prepped["in_dim"], prepped["out_dim"]
    in_p, out_p = prepped["in_p"], prepped["out_p"]
    n_layers = len(wts)

    B, x_in = x.shape
    assert x_in == in_dim, f"expected input dim {in_dim}, got {x_in}"

    # ---- batch tile size: dtype-aware granule, >=2 grid steps, VMEM budget --
    g = _row_granule(compute_dtype)
    tile_m = _round_up(max(g, tile_m), g)
    tile_m = min(tile_m, _round_up(B, g))             # don't over-tile tiny batches

    # Keep at least `min_grid_steps` grid steps when the batch allows it, so the
    # "parallel" grid axis can be sharded across v7x's two TensorCores.
    if min_grid_steps > 1 and _round_up(B, tile_m) // tile_m < min_grid_steps:
        per_step = _round_up(pl.cdiv(B, min_grid_steps), g)
        if g <= per_step < tile_m:
            tile_m = per_step

    # Explicit VMEM budget: resident weights (x buffer_count) + double-buffered
    # x / out tiles + f32 activation-staging headroom. Shrink tile_m if needed.
    itm_c = jnp.dtype(compute_dtype).itemsize
    itm_o = jnp.dtype(out_dtype).itemsize
    w_bytes = sum(int(w.size) * w.dtype.itemsize + int(b.size) * b.dtype.itemsize
                  for w, b in zip(wts, bss)) * max(1, weight_buffer_count)

    def _act_bytes(tm):
        return (2 * tm * in_p * itm_c        # input tile, double-buffered
                + 2 * tm * out_p * itm_o     # output tile, double-buffered
                + 2 * tm * max(in_p, out_p) * 4)  # f32 activation headroom

    while tile_m > g and w_bytes + _act_bytes(tile_m) > vmem_cap_bytes:
        tile_m = max(g, _round_up(tile_m // 2, g))
    needed = w_bytes + _act_bytes(tile_m)
    vmem_limit = int(min(max(2 * needed, 16 * 1024 * 1024), vmem_cap_bytes))
    # TODO(synk): once total resident weights alone exceed the cap, add an
    # output-feature (N) grid axis instead of keeping all layers resident.

    # ---- batch padding -------------------------------------------------------
    B_pad = _round_up(B, tile_m)
    x_p = jnp.zeros((B_pad, in_p), compute_dtype).at[:B, :in_dim].set(
        x.astype(compute_dtype))

    # ---- operand list + specs ------------------------------------------------
    single_buf = (weight_buffer_count == 1)
    wb_args, wb_specs = [], []
    for w, b in zip(wts, bss):
        wb_args += [w, b]
        for arr in (w, b):
            if single_buf:
                # Grid-invariant block: single-buffer it (halves its VMEM cost).
                wb_specs.append(pl.BlockSpec(arr.shape, lambda i: (0, 0),
                                             pipeline_mode=pl.Buffered(1)))
            else:
                wb_specs.append(pl.BlockSpec(arr.shape, lambda i: (0, 0)))

    grid = (B_pad // tile_m,)
    kernel = functools.partial(_mlp_kernel, n_layers=n_layers,
                               compute_dtype=compute_dtype)

    out_padded = pl.pallas_call(
        kernel,
        out_shape=jax.ShapeDtypeStruct((B_pad, out_p), out_dtype),
        grid_spec=pl.GridSpec(
            grid=grid,
            in_specs=[pl.BlockSpec((tile_m, in_p), lambda i: (i, 0))] + wb_specs,
            out_specs=pl.BlockSpec((tile_m, out_p), lambda i: (i, 0)),
        ),
        compiler_params=pltpu.CompilerParams(
            dimension_semantics=("parallel",),        # megacore-shardable grid
            vmem_limit_bytes=vmem_limit,
        ),
    )(x_p, *wb_args)

    # Slice away batch/feature padding.
    return out_padded[:B, :out_dim]


def mlp_forward(x, weights, biases, *, feature_align=128,
                compute_dtype=jnp.bfloat16, **kwargs):
    """One-shot convenience wrapper (prep + forward). Prefer prepare_mlp_params
    once + mlp_forward_prepared per call in real use."""
    prepped = prepare_mlp_params(weights, biases, feature_align=feature_align,
                                 compute_dtype=compute_dtype)
    return mlp_forward_prepared(x, prepped, **kwargs)


# ----------------------------------------------------------------------------
# Parameter init + pure-JAX reference (mirror the PyTorch module).
# ----------------------------------------------------------------------------
def init_mlp_params(key, layers):
    """Replicates the PyTorch module's layer list (incl. the duplicated final
    Linear) with torch.nn.Linear's default U(-1/sqrt(fan_in), 1/sqrt(fan_in))."""
    dims = [(layers[i], layers[i + 1]) for i in range(len(layers) - 1)]
    dims.append((layers[-2], layers[-1]))   # the extra duplicated last Linear

    weights, biases = [], []
    for (fan_in, fan_out) in dims:
        key, kw, kb = jax.random.split(key, 3)
        bound = 1.0 / math.sqrt(fan_in)
        W = jax.random.uniform(kw, (fan_out, fan_in), jnp.float32, -bound, bound)
        b = jax.random.uniform(kb, (fan_out,), jnp.float32, -bound, bound)
        weights.append(W)
        biases.append(b)
    return weights, biases


def mlp_reference(x, weights, biases):
    """Pure-JAX reference of the PyTorch forward."""
    h = x
    for W, b in zip(weights[:-1], biases[:-1]):
        h = jnp.tanh(h @ W.T + b)
    W, b = weights[-1], biases[-1]
    return h @ W.T + b


def _forward_with_fallback(x, prepped, **kwargs):
    """Run the kernel; if this Pallas version rejects single-buffered constant
    BlockSpecs (pl.Buffered(1)), fall back to default double-buffering."""
    try:
        return jax.block_until_ready(
            mlp_forward_prepared(x, prepped, weight_buffer_count=1, **kwargs))
    except Exception:
        return jax.block_until_ready(
            mlp_forward_prepared(x, prepped, weight_buffer_count=2, **kwargs))


if __name__ == "__main__":
    # layers[-1] == layers[-2] so the (faithfully reproduced) forward is
    # shape-consistent. batch=256 -> 2 parallel grid steps after the tile_m
    # clamp (both TensorCores busy on v7x).
    layers = [8, 32, 32, 32]
    batch = 256

    key = jax.random.PRNGKey(0)
    k_x, k_p = jax.random.split(key)
    x = jax.random.normal(k_x, (batch, layers[0]), dtype=jnp.float32)
    weights, biases = init_mlp_params(k_p, layers)

    ref = mlp_reference(x, weights, biases)

    # f32 MXU operands: tight numerical match with the reference.
    prep_f32 = prepare_mlp_params(weights, biases, compute_dtype=jnp.float32)
    out_f32 = _forward_with_fallback(x, prep_f32, tile_m=512)
    assert out_f32.shape == (batch, layers[-1])
    assert jnp.allclose(out_f32, ref, atol=1e-4, rtol=1e-4), "f32 kernel mismatch"

    # bf16 MXU operands (default fast path on v5e/v6e/v7x), f32 accumulation.
    prep_bf16 = prepare_mlp_params(weights, biases, compute_dtype=jnp.bfloat16)
    out_bf16 = _forward_with_fallback(x, prep_bf16, tile_m=512)
    assert out_bf16.shape == (batch, layers[-1])
    assert float(jnp.max(jnp.abs(out_bf16 - ref))) < 1e-1, "bf16 kernel mismatch"

    print("KERNEL_OK")
</pallas_src>

<mosaic_0001>
module attributes {stable_mosaic.version = 11 : i64} {
  func.func @_mlp_kernel(%arg0: i32, %arg1: memref<128x128xf32, #tpu.memory_space<vmem>>, %arg2: memref<128x128xf32, #tpu.memory_space<vmem>>, %arg3: memref<1x128xf32, #tpu.memory_space<vmem>>, %arg4: memref<128x128xf32, #tpu.memory_space<vmem>>, %arg5: memref<1x128xf32, #tpu.memory_space<vmem>>, %arg6: memref<128x128xf32, #tpu.memory_space<vmem>>, %arg7: memref<1x128xf32, #tpu.memory_space<vmem>>, %arg8: memref<128x128xf32, #tpu.memory_space<vmem>>, %arg9: memref<1x128xf32, #tpu.memory_space<vmem>>, %arg10: memref<128x128xf32, #tpu.memory_space<vmem>>) attributes {dimension_semantics = [#tpu.dimension_semantics<parallel>], iteration_bounds = array<i64: 2>, scalar_prefetch = 0 : i64, scratch_operands = 0 : i64, tpu.core_type = #tpu.core_type<tc>, window_params = [{transform_indices = @transform_0, window_bounds = array<i64: 128, 128>}, {pipeline_mode = #tpu.pipeline_mode<synchronous>, transform_indices = @transform_1, window_bounds = array<i64: 128, 128>}, {pipeline_mode = #tpu.pipeline_mode<synchronous>, transform_indices = @transform_2, window_bounds = array<i64: 1, 128>}, {pipeline_mode = #tpu.pipeline_mode<synchronous>, transform_indices = @transform_3, window_bounds = array<i64: 128, 128>}, {pipeline_mode = #tpu.pipeline_mode<synchronous>, transform_indices = @transform_4, window_bounds = array<i64: 1, 128>}, {pipeline_mode = #tpu.pipeline_mode<synchronous>, transform_indices = @transform_5, window_bounds = array<i64: 128, 128>}, {pipeline_mode = #tpu.pipeline_mode<synchronous>, transform_indices = @transform_6, window_bounds = array<i64: 1, 128>}, {pipeline_mode = #tpu.pipeline_mode<synchronous>, transform_indices = @transform_7, window_bounds = array<i64: 128, 128>}, {pipeline_mode = #tpu.pipeline_mode<synchronous>, transform_indices = @transform_8, window_bounds = array<i64: 1, 128>}, {transform_indices = @transform_9, window_bounds = array<i64: 128, 128>}]} {
    %c0 = arith.constant 0 : index
    %c0_0 = arith.constant 0 : index
    %0 = vector.load %arg1[%c0, %c0_0] : memref<128x128xf32, #tpu.memory_space<vmem>>, vector<128x128xf32>
    %c0_1 = arith.constant 0 : index
    %c0_2 = arith.constant 0 : index
    %1 = vector.load %arg2[%c0_1, %c0_2] : memref<128x128xf32, #tpu.memory_space<vmem>>, vector<128x128xf32>
    %c0_3 = arith.constant 0 : index
    %c0_4 = arith.constant 0 : index
    %2 = vector.load %arg3[%c0_3, %c0_4] : memref<1x128xf32, #tpu.memory_space<vmem>>, vector<1x128xf32>
    %cst = arith.constant dense<0.000000e+00> : vector<128x128xf32>
    %3 = tpu.matmul %0, %1, %cst {dimension_numbers = #tpu.dot_dimension_numbers<[1], [0], [0], [1], [0, 0, 1, 1], [], []>} : vector<128x128xf32>, vector<128x128xf32>, vector<128x128xf32> -> vector<128x128xf32>
    %4 = vector.broadcast %2 : vector<1x128xf32> to vector<128x128xf32>
    %5 = arith.addf %3, %4 : vector<128x128xf32>
    %6 = math.tanh %5 : vector<128x128xf32>
    %c0_5 = arith.constant 0 : index
    %c0_6 = arith.constant 0 : index
    %7 = vector.load %arg4[%c0_5, %c0_6] : memref<128x128xf32, #tpu.memory_space<vmem>>, vector<128x128xf32>
    %c0_7 = arith.constant 0 : index
    %c0_8 = arith.constant 0 : index
    %8 = vector.load %arg5[%c0_7, %c0_8] : memref<1x128xf32, #tpu.memory_space<vmem>>, vector<1x128xf32>
    %cst_9 = arith.constant dense<0.000000e+00> : vector<128x128xf32>
    %9 = tpu.matmul %6, %7, %cst_9 {dimension_numbers = #tpu.dot_dimension_numbers<[1], [0], [0], [1], [0, 0, 1, 1], [], []>} : vector<128x128xf32>, vector<128x128xf32>, vector<128x128xf32> -> vector<128x128xf32>
    %10 = vector.broadcast %8 : vector<1x128xf32> to vector<128x128xf32>
    %11 = arith.addf %9, %10 : vector<128x128xf32>
    %12 = math.tanh %11 : vector<128x128xf32>
    %c0_10 = arith.constant 0 : index
    %c0_11 = arith.constant 0 : index
    %13 = vector.load %arg6[%c0_10, %c0_11] : memref<128x128xf32, #tpu.memory_space<vmem>>, vector<128x128xf32>
    %c0_12 = arith.constant 0 : index
    %c0_13 = arith.constant 0 : index
    %14 = vector.load %arg7[%c0_12, %c0_13] : memref<1x128xf32, #tpu.memory_space<vmem>>, vector<1x128xf32>
    %cst_14 = arith.constant dense<0.000000e+00> : vector<128x128xf32>
    %15 = tpu.matmul %12, %13, %cst_14 {dimension_numbers = #tpu.dot_dimension_numbers<[1], [0], [0], [1], [0, 0, 1, 1], [], []>} : vector<128x128xf32>, vector<128x128xf32>, vector<128x128xf32> -> vector<128x128xf32>
    %16 = vector.broadcast %14 : vector<1x128xf32> to vector<128x128xf32>
    %17 = arith.addf %15, %16 : vector<128x128xf32>
    %18 = math.tanh %17 : vector<128x128xf32>
    %c0_15 = arith.constant 0 : index
    %c0_16 = arith.constant 0 : index
    %19 = vector.load %arg8[%c0_15, %c0_16] : memref<128x128xf32, #tpu.memory_space<vmem>>, vector<128x128xf32>
    %c0_17 = arith.constant 0 : index
    %c0_18 = arith.constant 0 : index
    %20 = vector.load %arg9[%c0_17, %c0_18] : memref<1x128xf32, #tpu.memory_space<vmem>>, vector<1x128xf32>
    %cst_19 = arith.constant dense<0.000000e+00> : vector<128x128xf32>
    %21 = tpu.matmul %18, %19, %cst_19 {dimension_numbers = #tpu.dot_dimension_numbers<[1], [0], [0], [1], [0, 0, 1, 1], [], []>} : vector<128x128xf32>, vector<128x128xf32>, vector<128x128xf32> -> vector<128x128xf32>
    %22 = vector.broadcast %20 : vector<1x128xf32> to vector<128x128xf32>
    %23 = arith.addf %21, %22 : vector<128x128xf32>
    %c0_20 = arith.constant 0 : index
    %c0_21 = arith.constant 0 : index
    %24 = vector.load %arg10[%c0_20, %c0_21] : memref<128x128xf32, #tpu.memory_space<vmem>>, vector<128x128xf32>
    tpu.vector_store %arg10[%c0_20, %c0_21], %23 {strides = array<i32>} : memref<128x128xf32, #tpu.memory_space<vmem>>, vector<128x128xf32>,
    return
  }
  func.func @transform_0(%arg0: i32) -> (i32, i32) {
    %c0_i32 = arith.constant 0 : i32
    %c0_i32_0 = arith.constant 0 : i32
    return %arg0, %c0_i32 : i32, i32
  }
  func.func @transform_1(%arg0: i32) -> (i32, i32) {
    %c0_i32 = arith.constant 0 : i32
    %c0_i32_0 = arith.constant 0 : i32
    %c0_i32_1 = arith.constant 0 : i32
    return %c0_i32, %c0_i32_0 : i32, i32
  }
  func.func @transform_2(%arg0: i32) -> (i32, i32) {
    %c0_i32 = arith.constant 0 : i32
    %c0_i32_0 = arith.constant 0 : i32
    %c0_i32_1 = arith.constant 0 : i32
    return %c0_i32, %c0_i32_0 : i32, i32
  }
  func.func @transform_3(%arg0: i32) -> (i32, i32) {
    %c0_i32 = arith.constant 0 : i32
    %c0_i32_0 = arith.constant 0 : i32
    %c0_i32_1 = arith.constant 0 : i32
    return %c0_i32, %c0_i32_0 : i32, i32
  }
  func.func @transform_4(%arg0: i32) -> (i32, i32) {
    %c0_i32 = arith.constant 0 : i32
    %c0_i32_0 = arith.constant 0 : i32
    %c0_i32_1 = arith.constant 0 : i32
    return %c0_i32, %c0_i32_0 : i32, i32
  }
  func.func @transform_5(%arg0: i32) -> (i32, i32) {
    %c0_i32 = arith.constant 0 : i32
    %c0_i32_0 = arith.constant 0 : i32
    %c0_i32_1 = arith.constant 0 : i32
    return %c0_i32, %c0_i32_0 : i32, i32
  }
  func.func @transform_6(%arg0: i32) -> (i32, i32) {
    %c0_i32 = arith.constant 0 : i32
    %c0_i32_0 = arith.constant 0 : i32
    %c0_i32_1 = arith.constant 0 : i32
    return %c0_i32, %c0_i32_0 : i32, i32
  }
  func.func @transform_7(%arg0: i32) -> (i32, i32) {
    %c0_i32 = arith.constant 0 : i32
    %c0_i32_0 = arith.constant 0 : i32
    %c0_i32_1 = arith.constant 0 : i32
    return %c0_i32, %c0_i32_0 : i32, i32
  }
  func.func @transform_8(%arg0: i32) -> (i32, i32) {
    %c0_i32 = arith.constant 0 : i32
    %c0_i32_0 = arith.constant 0 : i32
    %c0_i32_1 = arith.constant 0 : i32
    return %c0_i32, %c0_i32_0 : i32, i32
  }
  func.func @transform_9(%arg0: i32) -> (i32, i32) {
    %c0_i32 = arith.constant 0 : i32
    %c0_i32_0 = arith.constant 0 : i32
    return %arg0, %c0_i32 : i32, i32
  }
}

module attributes {stable_mosaic.version = 11 : i64} {
  func.func @_mlp_kernel(%arg0: i32, %arg1: memref<128x128xf32, #tpu.memory_space<vmem>>, %arg2: memref<128x128xf32, #tpu.memory_space<vmem>>, %arg3: memref<1x128xf32, #tpu.memory_space<vmem>>, %arg4: memref<128x128xf32, #tpu.memory_space<vmem>>, %arg5: memref<1x128xf32, #tpu.memory_space<vmem>>, %arg6: memref<128x128xf32, #tpu.memory_space<vmem>>, %arg7: memref<1x128xf32, #tpu.memory_space<vmem>>, %arg8: memref<128x128xf32, #tpu.memory_space<vmem>>, %arg9: memref<1x128xf32, #tpu.memory_space<vmem>>, %arg10: memref<128x128xf32, #tpu.memory_space<vmem>>) attributes {dimension_semantics = [#tpu.dimension_semantics<parallel>], iteration_bounds = array<i64: 2>, scalar_prefetch = 0 : i64, scratch_operands = 0 : i64, tpu.core_type = #tpu.core_type<tc>, window_params = [{transform_indices = @transform_0, window_bounds = array<i64: 128, 128>}, {pipeline_mode = #tpu.pipeline_mode<synchronous>, transform_indices = @transform_1, window_bounds = array<i64: 128, 128>}, {pipeline_mode = #tpu.pipeline_mode<synchronous>, transform_indices = @transform_2, window_bounds = array<i64: 1, 128>}, {pipeline_mode = #tpu.pipeline_mode<synchronous>, transform_indices = @transform_3, window_bounds = array<i64: 128, 128>}, {pipeline_mode = #tpu.pipeline_mode<synchronous>, transform_indices = @transform_4, window_bounds = array<i64: 1, 128>}, {pipeline_mode = #tpu.pipeline_mode<synchronous>, transform_indices = @transform_5, window_bounds = array<i64: 128, 128>}, {pipeline_mode = #tpu.pipeline_mode<synchronous>, transform_indices = @transform_6, window_bounds = array<i64: 1, 128>}, {pipeline_mode = #tpu.pipeline_mode<synchronous>, transform_indices = @transform_7, window_bounds = array<i64: 128, 128>}, {pipeline_mode = #tpu.pipeline_mode<synchronous>, transform_indices = @transform_8, window_bounds = array<i64: 1, 128>}, {transform_indices = @transform_9, window_bounds = array<i64: 128, 128>}]} {
    %c0 = arith.constant 0 : index
    %c0_0 = arith.constant 0 : index
    %0 = vector.load %arg1[%c0, %c0_0] : memref<128x128xf32, #tpu.memory_space<vmem>>, vector<128x128xf32>
    %c0_1 = arith.constant 0 : index
    %c0_2 = arith.constant 0 : index
    %1 = vector.load %arg2[%c0_1, %c0_2] : memref<128x128xf32, #tpu.memory_space<vmem>>, vector<128x128xf32>
    %c0_3 = arith.constant 0 : index
    %c0_4 = arith.constant 0 : index
    %2 = vector.load %arg3[%c0_3, %c0_4] : memref<1x128xf32, #tpu.memory_space<vmem>>, vector<1x128xf32>
    %cst = arith.constant dense<0.000000e+00> : vector<128x128xf32>
    %3 = tpu.matmul %0, %1, %cst {dimension_numbers = #tpu.dot_dimension_numbers<[1], [0], [0], [1], [0, 0, 1, 1], [], []>} : vector<128x128xf32>, vector<128x128xf32>, vector<128x128xf32> -> vector<128x128xf32>
    %4 = vector.broadcast %2 : vector<1x128xf32> to vector<128x128xf32>
    %5 = arith.addf %3, %4 : vector<128x128xf32>
    %6 = math.tanh %5 : vector<128x128xf32>
    %c0_5 = arith.constant 0 : index
    %c0_6 = arith.constant 0 : index
    %7 = vector.load %arg4[%c0_5, %c0_6] : memref<128x128xf32, #tpu.memory_space<vmem>>, vector<128x128xf32>
    %c0_7 = arith.constant 0 : index
    %c0_8 = arith.constant 0 : index
    %8 = vector.load %arg5[%c0_7, %c0_8] : memref<1x128xf32, #tpu.memory_space<vmem>>, vector<1x128xf32>
    %cst_9 = arith.constant dense<0.000000e+00> : vector<128x128xf32>
    %9 = tpu.matmul %6, %7, %cst_9 {dimension_numbers = #tpu.dot_dimension_numbers<[1], [0], [0], [1], [0, 0, 1, 1], [], []>} : vector<128x128xf32>, vector<128x128xf32>, vector<128x128xf32> -> vector<128x128xf32>
    %10 = vector.broadcast %8 : vector<1x128xf32> to vector<128x128xf32>
    %11 = arith.addf %9, %10 : vector<128x128xf32>
    %12 = math.tanh %11 : vector<128x128xf32>
    %c0_10 = arith.constant 0 : index
    %c0_11 = arith.constant 0 : index
    %13 = vector.load %arg6[%c0_10, %c0_11] : memref<128x128xf32, #tpu.memory_space<vmem>>, vector<128x128xf32>
    %c0_12 = arith.constant 0 : index
    %c0_13 = arith.constant 0 : index
    %14 = vector.load %arg7[%c0_12, %c0_13] : memref<1x128xf32, #tpu.memory_space<vmem>>, vector<1x128xf32>
    %cst_14 = arith.constant dense<0.000000e+00> : vector<128x128xf32>
    %15 = tpu.matmul %12, %13, %cst_14 {dimension_numbers = #tpu.dot_dimension_numbers<[1], [0], [0], [1], [0, 0, 1, 1], [], []>} : vector<128x128xf32>, vector<128x128xf32>, vector<128x128xf32> -> vector<128x128xf32>
    %16 = vector.broadcast %14 : vector<1x128xf32> to vector<128x128xf32>
    %17 = arith.addf %15, %16 : vector<128x128xf32>
    %18 = math.tanh %17 : vector<128x128xf32>
    %c0_15 = arith.constant 0 : index
    %c0_16 = arith.constant 0 : index
    %19 = vector.load %arg8[%c0_15, %c0_16] : memref<128x128xf32, #tpu.memory_space<vmem>>, vector<128x128xf32>
    %c0_17 = arith.constant 0 : index
    %c0_18 = arith.constant 0 : index
    %20 = vector.load %arg9[%c0_17, %c0_18] : memref<1x128xf32, #tpu.memory_space<vmem>>, vector<1x128xf32>
    %cst_19 = arith.constant dense<0.000000e+00> : vector<128x128xf32>
    %21 = tpu.matmul %18, %19, %cst_19 {dimension_numbers = #tpu.dot_dimension_numbers<[1], [0], [0], [1], [0, 0, 1, 1], [], []>} : vector<128x128xf32>, vector<128x128xf32>, vector<128x128xf32> -> vector<128x128xf32>
    %22 = vector.broadcast %20 : vector<1x128xf32> to vector<128x128xf32>
    %23 = arith.addf %21, %22 : vector<128x128xf32>
    %c0_20 = arith.constant 0 : index
    %c0_21 = arith.constant 0 : index
    %24 = vector.load %arg10[%c0_20, %c0_21] : memref<128x128xf32, #tpu.memory_space<vmem>>, vector<128x128xf32>
    tpu.vector_store %arg10[%c0_20, %c0_21], %23 {strides = array<i32>} : memref<128x128xf32, #tpu.memory_space<vmem>>, vector<128x128xf32>,
    return
  }
  func.func @transform_0(%arg0: i32) -> (i32, i32) {
    %c0_i32 = arith.constant 0 : i32
    %c0_i32_0 = arith.constant 0 : i32
    return %arg0, %c0_i32 : i32, i32
  }
  func.func @transform_1(%arg0: i32) -> (i32, i32) {
    %c0_i32 = arith.constant 0 : i32
    %c0_i32_0 = arith.constant 0 : i32
    %c0_i32_1 = arith.constant 0 : i32
    return %c0_i32, %c0_i32_0 : i32, i32
  }
  func.func @transform_2(%arg0: i32) -> (i32, i32) {
    %c0_i32 = arith.constant 0 : i32
    %c0_i32_0 = arith.constant 0 : i32
    %c0_i32_1 = arith.constant 0 : i32
    return %c0_i32, %c0_i32_0 : i32, i32
  }
  func.func @transform_3(%arg0: i32) -> (i32, i32) {
    %c0_i32 = arith.constant 0 : i32
    %c0_i32_0 = arith.constant 0 : i32
    %c0_i32_1 = arith.constant 0 : i32
    return %c0_i32, %c0_i32_0 : i32, i32
  }
  func.func @transform_4(%arg0: i32) -> (i32, i32) {
    %c0_i32 = arith.constant 0 : i32
    %c0_i32_0 = arith.constant 0 : i32
    %c0_i32_1 = arith.constant 0 : i32
    return %c0_i32, %c0_i32_0 : i32, i32
  }
  func.func @transform_5(%arg0: i32) -> (i32, i32) {
    %c0_i32 = arith.constant 0 : i32
    %c0_i32_0 = arith.constant 0 : i32
    %c0_i32_1 = arith.constant 0 : i32
    return %c0_i32, %c0_i32_0 : i32, i32
  }
  func.func @transform_6(%arg0: i32) -> (i32, i32) {
    %c0_i32 = arith.constant 0 : i32
    %c0_i32_0 = arith.constant 0 : i32
    %c0_i32_1 = arith.constant 0 : i32
    return %c0_i32, %c0_i32_0 : i32, i32
  }
  func.func @transform_7(%arg0: i32) -> (i32, i32) {
    %c0_i32 = arith.constant 0 : i32
    %c0_i32_0 = arith.constant 0 : i32
    %c0_i32_1 = arith.constant 0 : i32
    return %c0_i32, %c0_i32_0 : i32, i32
  }
  func.func @transform_8(%arg0: i32) -> (i32, i32) {
    %c0_i32 = arith.constant 0 : i32
    %c0_i32_0 = arith.constant 0 : i32
    %c0_i32_1 = arith.constant 0 : i32
    return %c0_i32, %c0_i32_0 : i32, i32
  }
  func.func @transform_9(%arg0: i32) -> (i32, i32) {
    %c0_i32 = arith.constant 0 : i32
    %c0_i32_0 = arith.constant 0 : i32
    return %arg0, %c0_i32 : i32, i32
  }
}

</mosaic_0001>

<llo_original>
// kernel: tpu_custom_call.1
$region0: #{tpu_custom_call.1}
  #allocation0 [shape = 'u32[]', space=smem, size = 0x4, offset = 0x4, fixed_abs, tag = 'smem constant byte address 0x4 - core index']
  #allocation1 [shape = 'u32[144,128]{1,0:T(1,128)}', space=vmem, size = 0x12000, scoped, tag = 'internal scratch']
  %s0 = inlined_call_operand.hbm [shape: f32[256,128], index: 0, kind: input, shape index: {}]
  %s1 = inlined_call_operand.hbm [shape: f32[128,128], index: 1, kind: input, shape index: {}]
  %s2 = inlined_call_operand.vmem [shape: f32[1,128], index: 2, kind: input, shape index: {}]
  %s3 = inlined_call_operand.hbm [shape: f32[128,128], index: 3, kind: input, shape index: {}]
  %s4 = inlined_call_operand.vmem [shape: f32[1,128], index: 4, kind: input, shape index: {}]
  %s5 = inlined_call_operand.hbm [shape: f32[128,128], index: 5, kind: input, shape index: {}]
  %s6 = inlined_call_operand.vmem [shape: f32[1,128], index: 6, kind: input, shape index: {}]
  %s7 = inlined_call_operand.hbm [shape: f32[128,128], index: 7, kind: input, shape index: {}]
  %s8 = inlined_call_operand.vmem [shape: f32[1,128], index: 8, kind: input, shape index: {}]
  %s9 = inlined_call_operand.hbm [shape: f32[256,128], index: 9, kind: output, shape index: {}]
  %s10 = sld [smem:[#allocation0]]
  $region89: #{tpu_custom_call.1} parent=0
    _
  %s12 = ssub.s32 1, %s10
  %s13 = scalar_select 0, %s12, %s10
  $region1: #{tpu_custom_call.1} parent=0
    #allocation2 [shape = 'u8[131072]{0}', space=vmem, size = 0x20000, scoped, tag = 'input window, operand 0']
    #allocation3 [shape = 's32[2]{0}', space=sflag, size = 0x8, scoped, tag = 'scoped memory for tpu_custom_call.1']
    #allocation4 [shape = 's32[2]{0}', space=sflag, size = 0x8, scoped, tag = 'scoped memory for tpu_custom_call.1']
    #allocation5 [shape = 'u8[65536]{0}', space=vmem, size = 0x10000, scoped, tag = 'input window, operand 1, single buffered']
    #allocation6 [shape = 's32[1]{0}', space=sflag, size = 0x4, scoped, tag = 'scoped memory for tpu_custom_call.1']
    #allocation7 [shape = 'u8[65536]{0}', space=vmem, size = 0x10000, scoped, tag = 'input window, operand 3, single buffered']
    #allocation8 [shape = 'u8[65536]{0}', space=vmem, size = 0x10000, scoped, tag = 'input window, operand 5, single buffered']
    #allocation9 [shape = 's32[1]{0}', space=sflag, size = 0x4, scoped, tag = 'scoped memory for tpu_custom_call.1']
    #allocation10 [shape = 'u8[65536]{0}', space=vmem, size = 0x10000, scoped, tag = 'input window, operand 7, single buffered']
    #allocation11 [shape = 'u8[131072]{0}', space=vmem, size = 0x20000, scoped, tag = 'output window, operand 0']
    %14 = vsyncpa [#allocation3], 0
    %s15 = scalar_lea.sflag [#allocation3], 1
    %16 = vsyncpa %s15, 0
    %17 = vsyncpa [#allocation6], 0
    %18 = vsyncpa [#allocation9], 0
    %19 = vsyncpa [#allocation4], 0
    %s20 = scalar_lea.sflag [#allocation4], 1
    %21 = vsyncpa %s20, 0
    loop: start=0, step=1, limit=4
    $region2: #{tpu_custom_call.1} parent=1 // loop_pre_header
      _
    $region3: #{tpu_custom_call.1} parent=1 // loop_header
      %s23 = sphi 0, %s27
      %p24 = scmp.ge.s32.totalorder %s23, 4
      %s33 = sphi 0, %s35
      %s36 = sphi 0, %s33
      %s37 = sphi 0, %s36
      %s53 = sphi 0, %s37
      %s57 = sphi 0, %s57
      %s59 = sphi 0, %s57
      %s60 = sphi 0, %s59
      %s74 = sphi 0, %s60
      %s78 = sphi 0, %s78
      %s80 = sphi 0, %s78
      %s81 = sphi 0, %s80
      %s95 = sphi 0, %s81
      %s99 = sphi 0, %s99
      %s101 = sphi 0, %s99
      %s102 = sphi 0, %s101
      %s116 = sphi 0, %s102
      %s120 = sphi 0, %s120
      %s122 = sphi 0, %s120
      %s123 = sphi 0, %s122
      %s137 = sphi 0, %s123
      %s141 = sphi 0, %s141
      %s143 = sphi 0, %s141
      %s144 = sphi 0, %s143
      %s158 = sphi 0, %s144
      %s162 = sphi 0, %s162
      %s164 = sphi 0, %s162
      %s165 = sphi 0, %s164
      %s179 = sphi 0, %s165
      %s183 = sphi 0, %s183
      %s185 = sphi 0, %s183
      %s186 = sphi 0, %s185
      %s200 = sphi 0, %s186
      %s204 = sphi 0, %s204
      %s206 = sphi 0, %s204
      %s207 = sphi 0, %s206
      %s221 = sphi 0, %s207
      %s227 = sphi 0, %s229
      %s230 = sphi 0, %s227
      %s231 = sphi 0, %s230
      %s247 = sphi 0, %s231
    $region4: #{tpu_custom_call.1} parent=1 // loop_header_branch
      %26 = sbr.rel (%p24) target = $region8
    $region5: #{tpu_custom_call.1} parent=1 // loop_body
      %s28 = ssub.s32 %s23, 1
      %s29 = ssub.s32 %s23, 2
      %s30 = sadd.s32 %s23, 1
      %s31 = ssub.s32 %s23, %s30
      %p32 = scmp.eq.s32.totalorder %s31, 0
      %s34 = sadd.s32 %s33, 1
      %s35 = scalar_select %p32, %s33, %s34
      %p38 = pneg %p32
      %p39 = scmp.eq.s32.totalorder %s23, 1
      %p40 = por %p38, %p39
      %p41 = scmp.ne.s32.totalorder %s33, %s36
      %p42 = scmp.eq.s32.totalorder %s23, 0
      %p43 = por %p41, %p42
      %p44 = scmp.ne.s32.totalorder %s33, %s36
      %p45 = scmp.eq.s32.totalorder %s28, 1
      %p46 = por %p44, %p45
      %p47 = scmp.ne.s32.totalorder %s36, %s37
      %p48 = scmp.eq.s32.totalorder %s28, 0
      %p49 = por %p47, %p48
      %p50 = scmp.ne.s32.totalorder %s36, %s37
      %p51 = scmp.eq.s32.totalorder %s29, 1
      %p52 = por %p50, %p51
      %p54 = scmp.ne.s32.totalorder %s37, %s53
      %p55 = scmp.eq.s32.totalorder %s29, 0
      %p56 = por %p54, %p55
      %s58 = sadd.s32 %s57, 1
      %p61 = scmp.eq.s32.totalorder %s23, 1
      %p62 = scmp.ne.s32.totalorder %s57, %s59
      %p63 = scmp.eq.s32.totalorder %s23, 0
      %p64 = por %p62, %p63
      %p65 = scmp.ne.s32.totalorder %s57, %s59
      %p66 = scmp.eq.s32.totalorder %s28, 1
      %p67 = por %p65, %p66
      %p68 = scmp.ne.s32.totalorder %s59, %s60
      %p69 = scmp.eq.s32.totalorder %s28, 0
      %p70 = por %p68, %p69
      %p71 = scmp.ne.s32.totalorder %s59, %s60
      %p72 = scmp.eq.s32.totalorder %s29, 1
      %p73 = por %p71, %p72
      %p75 = scmp.ne.s32.totalorder %s60, %s74
      %p76 = scmp.eq.s32.totalorder %s29, 0
      %p77 = por %p75, %p76
      %s79 = sadd.s32 %s78, 1
      %p82 = scmp.eq.s32.totalorder %s23, 1
      %p83 = scmp.ne.s32.totalorder %s78, %s80
      %p84 = scmp.eq.s32.totalorder %s23, 0
      %p85 = por %p83, %p84
      %p86 = scmp.ne.s32.totalorder %s78, %s80
      %p87 = scmp.eq.s32.totalorder %s28, 1
      %p88 = por %p86, %p87
      %p89 = scmp.ne.s32.totalorder %s80, %s81
      %p90 = scmp.eq.s32.totalorder %s28, 0
      %p91 = por %p89, %p90
      %p92 = scmp.ne.s32.totalorder %s80, %s81
      %p93 = scmp.eq.s32.totalorder %s29, 1
      %p94 = por %p92, %p93
      %p96 = scmp.ne.s32.totalorder %s81, %s95
      %p97 = scmp.eq.s32.totalorder %s29, 0
      %p98 = por %p96, %p97
      %s100 = sadd.s32 %s99, 1
      %p103 = scmp.eq.s32.totalorder %s23, 1
      %p104 = scmp.ne.s32.totalorder %s99, %s101
      %p105 = scmp.eq.s32.totalorder %s23, 0
      %p106 = por %p104, %p105
      %p107 = scmp.ne.s32.totalorder %s99, %s101
      %p108 = scmp.eq.s32.totalorder %s28, 1
      %p109 = por %p107, %p108
      %p110 = scmp.ne.s32.totalorder %s101, %s102
      %p111 = scmp.eq.s32.totalorder %s28, 0
      %p112 = por %p110, %p111
      %p113 = scmp.ne.s32.totalorder %s101, %s102
      %p114 = scmp.eq.s32.totalorder %s29, 1
      %p115 = por %p113, %p114
      %p117 = scmp.ne.s32.totalorder %s102, %s116
      %p118 = scmp.eq.s32.totalorder %s29, 0
      %p119 = por %p117, %p118
      %s121 = sadd.s32 %s120, 1
      %p124 = scmp.eq.s32.totalorder %s23, 1
      %p125 = scmp.ne.s32.totalorder %s120, %s122
      %p126 = scmp.eq.s32.totalorder %s23, 0
      %p127 = por %p125, %p126
      %p128 = scmp.ne.s32.totalorder %s120, %s122
      %p129 = scmp.eq.s32.totalorder %s28, 1
      %p130 = por %p128, %p129
      %p131 = scmp.ne.s32.totalorder %s122, %s123
      %p132 = scmp.eq.s32.totalorder %s28, 0
      %p133 = por %p131, %p132
      %p134 = scmp.ne.s32.totalorder %s122, %s123
      %p135 = scmp.eq.s32.totalorder %s29, 1
      %p136 = por %p134, %p135
      %p138 = scmp.ne.s32.totalorder %s123, %s137
      %p139 = scmp.eq.s32.totalorder %s29, 0
      %p140 = por %p138, %p139
      %s142 = sadd.s32 %s141, 1
      %p145 = scmp.eq.s32.totalorder %s23, 1
      %p146 = scmp.ne.s32.totalorder %s141, %s143
      %p147 = scmp.eq.s32.totalorder %s23, 0
      %p148 = por %p146, %p147
      %p149 = scmp.ne.s32.totalorder %s141, %s143
      %p150 = scmp.eq.s32.totalorder %s28, 1
      %p151 = por %p149, %p150
      %p152 = scmp.ne.s32.totalorder %s143, %s144
      %p153 = scmp.eq.s32.totalorder %s28, 0
      %p154 = por %p152, %p153
      %p155 = scmp.ne.s32.totalorder %s143, %s144
      %p156 = scmp.eq.s32.totalorder %s29, 1
      %p157 = por %p155, %p156
      %p159 = scmp.ne.s32.totalorder %s144, %s158
      %p160 = scmp.eq.s32.totalorder %s29, 0
      %p161 = por %p159, %p160
      %s163 = sadd.s32 %s162, 1
      %p166 = scmp.eq.s32.totalorder %s23, 1
      %p167 = scmp.ne.s32.totalorder %s162, %s164
      %p168 = scmp.eq.s32.totalorder %s23, 0
      %p169 = por %p167, %p168
      %p170 = scmp.ne.s32.totalorder %s162, %s164
      %p171 = scmp.eq.s32.totalorder %s28, 1
      %p172 = por %p170, %p171
      %p173 = scmp.ne.s32.totalorder %s164, %s165
      %p174 = scmp.eq.s32.totalorder %s28, 0
      %p175 = por %p173, %p174
      %p176 = scmp.ne.s32.totalorder %s164, %s165
      %p177 = scmp.eq.s32.totalorder %s29, 1
      %p178 = por %p176, %p177
      %p180 = scmp.ne.s32.totalorder %s165, %s179
      %p181 = scmp.eq.s32.totalorder %s29, 0
      %p182 = por %p180, %p181
      %s184 = sadd.s32 %s183, 1
      %p187 = scmp.eq.s32.totalorder %s23, 1
      %p188 = scmp.ne.s32.totalorder %s183, %s185
      %p189 = scmp.eq.s32.totalorder %s23, 0
      %p190 = por %p188, %p189
      %p191 = scmp.ne.s32.totalorder %s183, %s185
      %p192 = scmp.eq.s32.totalorder %s28, 1
      %p193 = por %p191, %p192
      %p194 = scmp.ne.s32.totalorder %s185, %s186
      %p195 = scmp.eq.s32.totalorder %s28, 0
      %p196 = por %p194, %p195
      %p197 = scmp.ne.s32.totalorder %s185, %s186
      %p198 = scmp.eq.s32.totalorder %s29, 1
      %p199 = por %p197, %p198
      %p201 = scmp.ne.s32.totalorder %s186, %s200
      %p202 = scmp.eq.s32.totalorder %s29, 0
      %p203 = por %p201, %p202
      %s205 = sadd.s32 %s204, 1
      %p208 = scmp.eq.s32.totalorder %s23, 1
      %p209 = scmp.ne.s32.totalorder %s204, %s206
      %p210 = scmp.eq.s32.totalorder %s23, 0
      %p211 = por %p209, %p210
      %p212 = scmp.ne.s32.totalorder %s204, %s206
      %p213 = scmp.eq.s32.totalorder %s28, 1
      %p214 = por %p212, %p213
      %p215 = scmp.ne.s32.totalorder %s206, %s207
      %p216 = scmp.eq.s32.totalorder %s28, 0
      %p217 = por %p215, %p216
      %p218 = scmp.ne.s32.totalorder %s206, %s207
      %p219 = scmp.eq.s32.totalorder %s29, 1
      %p220 = por %p218, %p219
      %p222 = scmp.ne.s32.totalorder %s207, %s221
      %p223 = scmp.eq.s32.totalorder %s29, 0
      %p224 = por %p222, %p223
      %s225 = ssub.s32 %s23, %s30
      %p226 = scmp.eq.s32.totalorder %s225, 0
      %s228 = sadd.s32 %s227, 1
      %s229 = scalar_select %p226, %s227, %s228
      %p232 = pneg %p226
      %p233 = scmp.eq.s32.totalorder %s23, 1
      %p234 = por %p232, %p233
      %p235 = scmp.ne.s32.totalorder %s227, %s230
      %p236 = scmp.eq.s32.totalorder %s23, 0
      %p237 = por %p235, %p236
      %p238 = scmp.ne.s32.totalorder %s227, %s230
      %p239 = scmp.eq.s32.totalorder %s28, 1
      %p240 = por %p238, %p239
      %p241 = scmp.ne.s32.totalorder %s230, %s231
      %p242 = scmp.eq.s32.totalorder %s28, 0
      %p243 = por %p241, %p242
      %p244 = scmp.ne.s32.totalorder %s230, %s231
      %p245 = scmp.eq.s32.totalorder %s29, 1
      %p246 = por %p244, %p245
      %p248 = scmp.ne.s32.totalorder %s231, %s247
      %p249 = scmp.eq.s32.totalorder %s29, 0
      %p250 = por %p248, %p249
      %p251 = scmp.le.s32.totalorder 1, %s23
      %p252 = scmp.lt.s32.totalorder %s23, 3
      %p253 = pnand %p251, %p252
      %p254 = pneg %p253
      // Predicated region
      $region9: #{tpu_custom_call.1} parent=5 // pred_check
        _
      $region10: #{tpu_custom_call.1} parent=5 // pred_check_branch
        %256 = sbr.rel (%p253) target = $region12
      $region11: #{tpu_custom_call.1} parent=5 // pred_region
        %s257 = ssub.s32 %s23, 1
        // Predicated region
        $region13: #{tpu_custom_call.1} parent=11 // pred_check
          %p258 = pneg %p70
        $region14: #{tpu_custom_call.1} parent=11 // pred_check_branch
          %260 = sbr.rel (%p258) target = $region16
        $region15: #{tpu_custom_call.1} parent=11 // pred_region
          %s262 = ssub.s32 2048, 2048
          %263 = vsyncadd [#allocation6], %s262
          %s264 = sshll.u32 [#allocation5], 4
          %s265 = int_to_ptr.vmem [resolvable:$true] %s264
          %270 = dma.hbm_to_vmem [thread:$0]  %s1, 2048, %s265, [#allocation6], 128, 128, 8
        $region16: #{tpu_custom_call.1} parent=11 // pred_fallthru
          _
        // Predicated region
        $region17: #{tpu_custom_call.1} parent=11 // pred_check
          %p271 = pneg %p91
        $region18: #{tpu_custom_call.1} parent=11 // pred_check_branch
          %273 = sbr.rel (%p271) target = $region20
        $region19: #{tpu_custom_call.1} parent=11 // pred_region
          _
        $region20: #{tpu_custom_call.1} parent=11 // pred_fallthru
          _
        // Predicated region
        $region21: #{tpu_custom_call.1} parent=11 // pred_check
          %p274 = pneg %p112
        $region22: #{tpu_custom_call.1} parent=11 // pred_check_branch
          %276 = sbr.rel (%p274) target = $region24
        $region23: #{tpu_custom_call.1} parent=11 // pred_region
          %s278 = ssub.s32 2048, 2048
          %279 = vsyncadd [#allocation6], %s278
          %s280 = sshll.u32 [#allocation7], 4
          %s281 = int_to_ptr.vmem [resolvable:$true] %s280
          %286 = dma.hbm_to_vmem [thread:$0]  %s3, 2048, %s281, [#allocation6], 128, 128, 8
        $region24: #{tpu_custom_call.1} parent=11 // pred_fallthru
          _
        // Predicated region
        $region25: #{tpu_custom_call.1} parent=11 // pred_check
          %p287 = pneg %p133
        $region26: #{tpu_custom_call.1} parent=11 // pred_check_branch
          %289 = sbr.rel (%p287) target = $region28
        $region27: #{tpu_custom_call.1} parent=11 // pred_region
          _
        $region28: #{tpu_custom_call.1} parent=11 // pred_fallthru
          _
        // Predicated region
        $region29: #{tpu_custom_call.1} parent=11 // pred_check
          %p290 = pneg %p154
        $region30: #{tpu_custom_call.1} parent=11 // pred_check_branch
          %292 = sbr.rel (%p290) target = $region32
        $region31: #{tpu_custom_call.1} parent=11 // pred_region
          %s294 = ssub.s32 2048, 2048
          %295 = vsyncadd [#allocation9], %s294
          %s296 = sshll.u32 [#allocation8], 4
          %s297 = int_to_ptr.vmem [resolvable:$true] %s296
          %302 = dma.hbm_to_vmem [thread:$0]  %s5, 2048, %s297, [#allocation9], 128, 128, 8
        $region32: #{tpu_custom_call.1} parent=11 // pred_fallthru
          _
        // Predicated region
        $region33: #{tpu_custom_call.1} parent=11 // pred_check
          %p303 = pneg %p175
        $region34: #{tpu_custom_call.1} parent=11 // pred_check_branch
          %305 = sbr.rel (%p303) target = $region36
        $region35: #{tpu_custom_call.1} parent=11 // pred_region
          _
        $region36: #{tpu_custom_call.1} parent=11 // pred_fallthru
          _
        // Predicated region
        $region37: #{tpu_custom_call.1} parent=11 // pred_check
          %p306 = pneg %p196
        $region38: #{tpu_custom_call.1} parent=11 // pred_check_branch
          %308 = sbr.rel (%p306) target = $region40
        $region39: #{tpu_custom_call.1} parent=11 // pred_region
          %s310 = ssub.s32 2048, 2048
          %311 = vsyncadd [#allocation9], %s310
          %s312 = sshll.u32 [#allocation10], 4
          %s313 = int_to_ptr.vmem [resolvable:$true] %s312
          %318 = dma.hbm_to_vmem [thread:$0]  %s7, 2048, %s313, [#allocation9], 128, 128, 8
        $region40: #{tpu_custom_call.1} parent=11 // pred_fallthru
          _
        // Predicated region
        $region41: #{tpu_custom_call.1} parent=11 // pred_check
          %p319 = pneg %p217
        $region42: #{tpu_custom_call.1} parent=11 // pred_check_branch
          %321 = sbr.rel (%p319) target = $region44
        $region43: #{tpu_custom_call.1} parent=11 // pred_region
          _
        $region44: #{tpu_custom_call.1} parent=11 // pred_fallthru
          _
      $region12: #{tpu_custom_call.1} parent=5 // pred_fallthru
        _
      %p322 = scmp.lt.s32.totalorder %s23, 2
      // Predicated region
      $region45: #{tpu_custom_call.1} parent=5 // pred_check
        %p323 = pneg %p322
      $region46: #{tpu_custom_call.1} parent=5 // pred_check_branch
        %325 = sbr.rel (%p323) target = $region48
      $region47: #{tpu_custom_call.1} parent=5 // pred_region
        // Predicated region
        $region49: #{tpu_custom_call.1} parent=47 // pred_check
          %p326 = pneg %p43
        $region50: #{tpu_custom_call.1} parent=47 // pred_check_branch
          %328 = sbr.rel (%p326) target = $region52
        $region51: #{tpu_custom_call.1} parent=47 // pred_region
          %s329 = sand.u32 %s33, 1
          %s330 = scalar_lea.sflag [#allocation3], %s329
          %s331 = sand.u32 %s33, 1
          %s332 = smul.addr %s331, 128
          %s333 = scalar_lea.vmem [#allocation2], %s332
          %s334 = smul.u32 16, %s23
          %s336 = ssub.s32 2048, 2048
          %337 = vsyncadd %s330, %s336
          %s338 = smul.addr %s334, 128
          %s339 = scalar_lea.hbm %s0, %s338
          %s340 = sshll.u32 %s333, 4
          %s341 = int_to_ptr.vmem [resolvable:$true] %s340
          %346 = dma.hbm_to_vmem [thread:$0]  %s339, 2048, %s341, %s330, 128, 128, 8
        $region52: #{tpu_custom_call.1} parent=47 // pred_fallthru
          _
      $region48: #{tpu_custom_call.1} parent=5 // pred_fallthru
        _
      %p347 = scmp.le.s32.totalorder 1, %s23
      %p348 = scmp.lt.s32.totalorder %s23, 3
      %p349 = pnand %p347, %p348
      %p350 = pneg %p349
      // Predicated region
      $region53: #{tpu_custom_call.1} parent=5 // pred_check
        _
      $region54: #{tpu_custom_call.1} parent=5 // pred_check_branch
        %352 = sbr.rel (%p349) target = $region56
      $region55: #{tpu_custom_call.1} parent=5 // pred_region
        %s353 = ssub.s32 %s23, 1
        %s354 = sand.u32 %s36, 1
        %s355 = scalar_lea.sflag [#allocation3], %s354
        %s356 = sand.u32 %s36, 1
        %s357 = smul.addr %s356, 128
        %s358 = scalar_lea.vmem [#allocation2], %s357
        // Predicated region
        $region57: #{tpu_custom_call.1} parent=55 // pred_check
          %p359 = pneg %p49
        $region58: #{tpu_custom_call.1} parent=55 // pred_check_branch
          %361 = sbr.rel (%p359) target = $region60
        $region59: #{tpu_custom_call.1} parent=55 // pred_region
          %362 = dma.done %s355, 2048
        $region60: #{tpu_custom_call.1} parent=55 // pred_fallthru
          _
        // Predicated region
        $region61: #{tpu_custom_call.1} parent=55 // pred_check
          %p363 = pneg %p70
        $region62: #{tpu_custom_call.1} parent=55 // pred_check_branch
          %365 = sbr.rel (%p363) target = $region64
        $region63: #{tpu_custom_call.1} parent=55 // pred_region
          %366 = dma.done [#allocation6], 2048
        $region64: #{tpu_custom_call.1} parent=55 // pred_fallthru
          _
        // Predicated region
        $region65: #{tpu_custom_call.1} parent=55 // pred_check
          %p367 = pneg %p112
        $region66: #{tpu_custom_call.1} parent=55 // pred_check_branch
          %369 = sbr.rel (%p367) target = $region68
        $region67: #{tpu_custom_call.1} parent=55 // pred_region
          %370 = dma.done [#allocation6], 2048
        $region68: #{tpu_custom_call.1} parent=55 // pred_fallthru
          _
        // Predicated region
        $region69: #{tpu_custom_call.1} parent=55 // pred_check
          %p371 = pneg %p154
        $region70: #{tpu_custom_call.1} parent=55 // pred_check_branch
          %373 = sbr.rel (%p371) target = $region72
        $region71: #{tpu_custom_call.1} parent=55 // pred_region
          %374 = dma.done [#allocation9], 2048
        $region72: #{tpu_custom_call.1} parent=55 // pred_fallthru
          _
        // Predicated region
        $region73: #{tpu_custom_call.1} parent=55 // pred_check
          %p375 = pneg %p196
        $region74: #{tpu_custom_call.1} parent=55 // pred_check_branch
          %377 = sbr.rel (%p375) target = $region76
        $region75: #{tpu_custom_call.1} parent=55 // pred_region
          %378 = dma.done [#allocation9], 2048
        $region76: #{tpu_custom_call.1} parent=55 // pred_fallthru
          _
        %s379 = sand.u32 %s36, 1
        %s380 = scalar_lea.sflag [#allocation3], %s379
        %s381 = sand.u32 %s36, 1
        %s382 = smul.addr %s381, 128
        %s383 = scalar_lea.vmem [#allocation2], %s382
        %p384 = pneg %p49
        %p385 = pneg %p46
        %p386 = pneg %p70
        %p387 = pneg %p67
        %p388 = pneg %p91
        %p389 = pneg %p88
        %p390 = pneg %p112
        %p391 = pneg %p109
        %p392 = pneg %p133
        %p393 = pneg %p130
        %p394 = pneg %p154
        %p395 = pneg %p151
        %p396 = pneg %p175
        %p397 = pneg %p172
        %p398 = pneg %p196
        %p399 = pneg %p193
        %p400 = pneg %p217
        %p401 = pneg %p214
        %p402 = pneg %p243
        %p403 = pneg %p240
        %s404 = sand.u32 %s230, 1
        %s405 = scalar_lea.sflag [#allocation4], %s404
        %s406 = sand.u32 %s230, 1
        %s407 = smul.addr %s406, 128
        %s408 = scalar_lea.vmem [#allocation11], %s407
        %s409 = smul.u32 16, %s28
        %s410 = smul.u32 16, %s28
        %v411 = vld [vmem:[%s358] sm:$0xff]
        %v412 = vld [vmem:[%s358 + $0x8] sm:$0xff]
        %v413 = vld [vmem:[%s358 + $0x10] sm:$0xff]
        %v414 = vld [vmem:[%s358 + $0x18] sm:$0xff]
        %v415 = vld [vmem:[%s358 + $0x20] sm:$0xff]
        %v416 = vld [vmem:[%s358 + $0x28] sm:$0xff]
        %v417 = vld [vmem:[%s358 + $0x30] sm:$0xff]
        %v418 = vld [vmem:[%s358 + $0x38] sm:$0xff]
        %v419 = vld [vmem:[%s358 + $0x40] sm:$0xff]
        %v420 = vld [vmem:[%s358 + $0x48] sm:$0xff]
        %v421 = vld [vmem:[%s358 + $0x50] sm:$0xff]
        %v422 = vld [vmem:[%s358 + $0x58] sm:$0xff]
        %v423 = vld [vmem:[%s358 + $0x60] sm:$0xff]
        %v424 = vld [vmem:[%s358 + $0x68] sm:$0xff]
        %v425 = vld [vmem:[%s358 + $0x70] sm:$0xff]
        %v426 = vld [vmem:[%s358 + $0x78] sm:$0xff]
        %v427 = vld [vmem:[#allocation5] sm:$0xff]
        %v428 = vld [vmem:[#allocation5 + $0x8] sm:$0xff]
        %v429 = vld [vmem:[#allocation5 + $0x10] sm:$0xff]
        %v430 = vld [vmem:[#allocation5 + $0x18] sm:$0xff]
        %v431 = vld [vmem:[#allocation5 + $0x20] sm:$0xff]
        %v432 = vld [vmem:[#allocation5 + $0x28] sm:$0xff]
        %v433 = vld [vmem:[#allocation5 + $0x30] sm:$0xff]
        %v434 = vld [vmem:[#allocation5 + $0x38] sm:$0xff]
        %v435 = vld [vmem:[#allocation5 + $0x40] sm:$0xff]
        %v436 = vld [vmem:[#allocation5 + $0x48] sm:$0xff]
        %v437 = vld [vmem:[#allocation5 + $0x50] sm:$0xff]
        %v438 = vld [vmem:[#allocation5 + $0x58] sm:$0xff]
        %v439 = vld [vmem:[#allocation5 + $0x60] sm:$0xff]
        %v440 = vld [vmem:[#allocation5 + $0x68] sm:$0xff]
        %v441 = vld [vmem:[#allocation5 + $0x70] sm:$0xff]
        %v442 = vld [vmem:[#allocation5 + $0x78] sm:$0xff]
        %v443 = vld [vmem:[%s2] sm:$0x1]
        %v445 = vlaneseq
        %v446 = vshrl.u32 %v445, 7
        %v447 = vsub.s32 0, %v446
        %v448 = vrot.slane %v443, %v447
        %450 = vmatprep.subr.mxu0 0.0
        %451 = vmatpush1.msra.mxu0 %v427
        %452 = vmatprep.subr.mxu0 0.0
        %453 = vmatpush1.msra.mxu0 %v428
        %454 = vmatprep.subr.mxu0 0.0
        %455 = vmatpush1.msra.mxu0 %v429
        %456 = vmatprep.subr.mxu0 0.0
        %457 = vmatpush1.msra.mxu0 %v430
        %458 = vmatprep.subr.mxu0 0.0
        %459 = vmatpush1.msra.mxu0 %v431
        %460 = vmatprep.subr.mxu0 0.0
        %461 = vmatpush1.msra.mxu0 %v432
        %462 = vmatprep.subr.mxu0 0.0
        %463 = vmatpush1.msra.mxu0 %v433
        %464 = vmatprep.subr.mxu0 0.0
        %465 = vmatpush1.msra.mxu0 %v434
        %466 = vmatprep.subr.mxu0 0.0
        %467 = vmatpush1.msra.mxu0 %v435
        %468 = vmatprep.subr.mxu0 0.0
        %469 = vmatpush1.msra.mxu0 %v436
        %470 = vmatprep.subr.mxu0 0.0
        %471 = vmatpush1.msra.mxu0 %v437
        %472 = vmatprep.subr.mxu0 0.0
        %473 = vmatpush1.msra.mxu0 %v438
        %474 = vmatprep.subr.mxu0 0.0
        %475 = vmatpush1.msra.mxu0 %v439
        %476 = vmatprep.subr.mxu0 0.0
        %477 = vmatpush1.msra.mxu0 %v440
        %478 = vmatprep.subr.mxu0 0.0
        %479 = vmatpush1.msra.mxu0 %v441
        %480 = vmatprep.subr.mxu0 0.0
        %481 = vmatpush1.msra.mxu0 %v442
        %482 = vmatprep.subr.mxu0 0.0
        %483 = vmatpush1.msra.mxu0 0.0
        %484 = vmatprep.subr.mxu0 0.0
        %485 = vmatpush1.msra.mxu0 0.0
        %486 = vmatprep.subr.mxu0 0.0
        %487 = vmatpush1.msra.mxu0 0.0
        %488 = vmatprep.subr.mxu0 0.0
        %489 = vmatpush1.msra.mxu0 0.0
        %490 = vmatprep.subr.mxu0 0.0
        %491 = vmatpush1.msra.mxu0 0.0
        %492 = vmatprep.subr.mxu0 0.0
        %493 = vmatpush1.msra.mxu0 0.0
        %494 = vmatprep.subr.mxu0 0.0
        %495 = vmatpush1.msra.mxu0 0.0
        %496 = vmatprep.subr.mxu0 0.0
        %497 = vmatpush1.msra.mxu0 0.0
        %498 = vmatprep.subr.mxu0 0.0
        %499 = vmatpush1.msra.mxu0 0.0
        %500 = vmatprep.subr.mxu0 0.0
        %501 = vmatpush1.msra.mxu0 0.0
        %502 = vmatprep.subr.mxu0 0.0
        %503 = vmatpush1.msra.mxu0 0.0
        %504 = vmatprep.subr.mxu0 0.0
        %505 = vmatpush1.msra.mxu0 0.0
        %506 = vmatprep.subr.mxu0 0.0
        %507 = vmatpush1.msra.mxu0 0.0
        %508 = vmatprep.subr.mxu0 0.0
        %509 = vmatpush1.msra.mxu0 0.0
        %510 = vmatprep.subr.mxu0 0.0
        %511 = vmatpush1.msra.mxu0 0.0
        %512 = vmatprep.subr.mxu0 0.0
        %513 = vmatpush1.msra.mxu0 0.0
        %514 = vmatprep.mubr.f32.mxu0 0.0
        %515 = vmatmul.mubr.f32.gmra.mrb[0].mxu0 %v411
        %v516 = vpop.f32.mrb[0].mxu0
        %v517 = vadd.f32 %v448, %v516
        %v518 = vpop.f32.mrb[0].mxu0
        %519 = vmatprep.mubr.f32.mxu0 0.0
        %520 = vmatmul.mubr.f32.gmra.mrb[0].mxu0 %v412
        %v521 = vpop.f32.mrb[0].mxu0
        %v522 = vadd.f32 %v448, %v521
        %v523 = vpop.f32.mrb[0].mxu0
        %524 = vmatprep.mubr.f32.mxu0 0.0
        %525 = vmatmul.mubr.f32.gmra.mrb[0].mxu0 %v413
        %v526 = vpop.f32.mrb[0].mxu0
        %v527 = vadd.f32 %v448, %v526
        %v528 = vpop.f32.mrb[0].mxu0
        %529 = vmatprep.mubr.f32.mxu0 0.0
        %530 = vmatmul.mubr.f32.gmra.mrb[0].mxu0 %v414
        %v531 = vpop.f32.mrb[0].mxu0
        %v532 = vadd.f32 %v448, %v531
        %v533 = vpop.f32.mrb[0].mxu0
        %534 = vmatprep.mubr.f32.mxu0 0.0
        %535 = vmatmul.mubr.f32.gmra.mrb[0].mxu0 %v415
        %v536 = vpop.f32.mrb[0].mxu0
        %v537 = vadd.f32 %v448, %v536
        %v538 = vpop.f32.mrb[0].mxu0
        %539 = vmatprep.mubr.f32.mxu0 0.0
        %540 = vmatmul.mubr.f32.gmra.mrb[0].mxu0 %v416
        %v541 = vpop.f32.mrb[0].mxu0
        %v542 = vadd.f32 %v448, %v541
        %v543 = vpop.f32.mrb[0].mxu0
        %544 = vmatprep.mubr.f32.mxu0 0.0
        %545 = vmatmul.mubr.f32.gmra.mrb[0].mxu0 %v417
        %v546 = vpop.f32.mrb[0].mxu0
        %v547 = vadd.f32 %v448, %v546
        %v548 = vpop.f32.mrb[0].mxu0
        %549 = vmatprep.mubr.f32.mxu0 0.0
        %550 = vmatmul.mubr.f32.gmra.mrb[0].mxu0 %v418
        %v551 = vpop.f32.mrb[0].mxu0
        %v552 = vadd.f32 %v448, %v551
        %v553 = vpop.f32.mrb[0].mxu0
        %554 = vmatprep.mubr.f32.mxu0 0.0
        %555 = vmatmul.mubr.f32.gmra.mrb[0].mxu0 %v419
        %v556 = vpop.f32.mrb[0].mxu0
        %v557 = vadd.f32 %v448, %v556
        %v558 = vpop.f32.mrb[0].mxu0
        %559 = vmatprep.mubr.f32.mxu0 0.0
        %560 = vmatmul.mubr.f32.gmra.mrb[0].mxu0 %v420
        %v561 = vpop.f32.mrb[0].mxu0
        %v562 = vadd.f32 %v448, %v561
        %v563 = vpop.f32.mrb[0].mxu0
        %564 = vmatprep.mubr.f32.mxu0 0.0
        %565 = vmatmul.mubr.f32.gmra.mrb[0].mxu0 %v421
        %v566 = vpop.f32.mrb[0].mxu0
        %v567 = vadd.f32 %v448, %v566
        %v568 = vpop.f32.mrb[0].mxu0
        %569 = vmatprep.mubr.f32.mxu0 0.0
        %570 = vmatmul.mubr.f32.gmra.mrb[0].mxu0 %v422
        %v571 = vpop.f32.mrb[0].mxu0
        %v572 = vadd.f32 %v448, %v571
        %v573 = vpop.f32.mrb[0].mxu0
        %574 = vmatprep.mubr.f32.mxu0 0.0
        %575 = vmatmul.mubr.f32.gmra.mrb[0].mxu0 %v423
        %v576 = vpop.f32.mrb[0].mxu0
        %v577 = vadd.f32 %v448, %v576
        %v578 = vpop.f32.mrb[0].mxu0
        %579 = vmatprep.mubr.f32.mxu0 0.0
        %580 = vmatmul.mubr.f32.gmra.mrb[0].mxu0 %v424
        %v581 = vpop.f32.mrb[0].mxu0
        %v582 = vadd.f32 %v448, %v581
        %v583 = vpop.f32.mrb[0].mxu0
        %584 = vmatprep.mubr.f32.mxu0 0.0
        %585 = vmatmul.mubr.f32.gmra.mrb[0].mxu0 %v425
        %v586 = vpop.f32.mrb[0].mxu0
        %v587 = vadd.f32 %v448, %v586
        %v588 = vpop.f32.mrb[0].mxu0
        %589 = vmatprep.mubr.f32.mxu0 0.0
        %590 = vmatmul.mubr.f32.gmra.mrb[0].mxu0 %v426
        %v591 = vpop.f32.mrb[0].mxu0
        %v592 = vadd.f32 %v448, %v591
        %v593 = vpop.f32.mrb[0].mxu0
        %594 = vdwg.mxu0
        %v595 = vtanh.pop %v517
        %v596 = vtanh.pop %v522
        %v597 = vtanh.pop %v527
        %v598 = vtanh.pop %v532
        %v599 = vtanh.pop %v537
        %v600 = vtanh.pop %v542
        %v601 = vtanh.pop %v547
        %v602 = vtanh.pop %v552
        %v603 = vtanh.pop %v557
        %v604 = vtanh.pop %v562
        %v605 = vtanh.pop %v567
        %v606 = vtanh.pop %v572
        %v607 = vtanh.pop %v577
        %v608 = vtanh.pop %v582
        %v609 = vtanh.pop %v587
        %v610 = vtanh.pop %v592
        %v611 = vld [vmem:[#allocation7] sm:$0xff]
        %v612 = vld [vmem:[#allocation7 + $0x8] sm:$0xff]
        %v613 = vld [vmem:[#allocation7 + $0x10] sm:$0xff]
        %v614 = vld [vmem:[#allocation7 + $0x18] sm:$0xff]
        %v615 = vld [vmem:[#allocation7 + $0x20] sm:$0xff]
        %v616 = vld [vmem:[#allocation7 + $0x28] sm:$0xff]
        %v617 = vld [vmem:[#allocation7 + $0x30] sm:$0xff]
        %v618 = vld [vmem:[#allocation7 + $0x38] sm:$0xff]
        %v619 = vld [vmem:[#allocation7 + $0x40] sm:$0xff]
        %v620 = vld [vmem:[#allocation7 + $0x48] sm:$0xff]
        %v621 = vld [vmem:[#allocation7 + $0x50] sm:$0xff]
        %v622 = vld [vmem:[#allocation7 + $0x58] sm:$0xff]
        %v623 = vld [vmem:[#allocation7 + $0x60] sm:$0xff]
        %v624 = vld [vmem:[#allocation7 + $0x68] sm:$0xff]
        %v625 = vld [vmem:[#allocation7 + $0x70] sm:$0xff]
        %v626 = vld [vmem:[#allocation7 + $0x78] sm:$0xff]
        %v627 = vld [vmem:[%s4] sm:$0x1]
        %v629 = vlaneseq
        %v630 = vshrl.u32 %v629, 7
        %v631 = vsub.s32 0, %v630
        %v632 = vrot.slane %v627, %v631
        %634 = vmatprep.subr.mxu0 0.0
        %635 = vmatpush1.msra.mxu0 %v611
        %636 = vmatprep.subr.mxu0 0.0
        %637 = vmatpush1.msra.mxu0 %v612
        %638 = vmatprep.subr.mxu0 0.0
        %639 = vmatpush1.msra.mxu0 %v613
        %640 = vmatprep.subr.mxu0 0.0
        %641 = vmatpush1.msra.mxu0 %v614
        %642 = vmatprep.subr.mxu0 0.0
        %643 = vmatpush1.msra.mxu0 %v615
        %644 = vmatprep.subr.mxu0 0.0
        %645 = vmatpush1.msra.mxu0 %v616
        %646 = vmatprep.subr.mxu0 0.0
        %647 = vmatpush1.msra.mxu0 %v617
        %648 = vmatprep.subr.mxu0 0.0
        %649 = vmatpush1.msra.mxu0 %v618
        %650 = vmatprep.subr.mxu0 0.0
        %651 = vmatpush1.msra.mxu0 %v619
        %652 = vmatprep.subr.mxu0 0.0
        %653 = vmatpush1.msra.mxu0 %v620
        %654 = vmatprep.subr.mxu0 0.0
        %655 = vmatpush1.msra.mxu0 %v621
        %656 = vmatprep.subr.mxu0 0.0
        %657 = vmatpush1.msra.mxu0 %v622
        %658 = vmatprep.subr.mxu0 0.0
        %659 = vmatpush1.msra.mxu0 %v623
        %660 = vmatprep.subr.mxu0 0.0
        %661 = vmatpush1.msra.mxu0 %v624
        %662 = vmatprep.subr.mxu0 0.0
        %663 = vmatpush1.msra.mxu0 %v625
        %664 = vmatprep.subr.mxu0 0.0
        %665 = vmatpush1.msra.mxu0 %v626
        %666 = vmatprep.subr.mxu0 0.0
        %667 = vmatpush1.msra.mxu0 0.0
        %668 = vmatprep.subr.mxu0 0.0
        %669 = vmatpush1.msra.mxu0 0.0
        %670 = vmatprep.subr.mxu0 0.0
        %671 = vmatpush1.msra.mxu0 0.0
        %672 = vmatprep.subr.mxu0 0.0
        %673 = vmatpush1.msra.mxu0 0.0
        %674 = vmatprep.subr.mxu0 0.0
        %675 = vmatpush1.msra.mxu0 0.0
        %676 = vmatprep.subr.mxu0 0.0
        %677 = vmatpush1.msra.mxu0 0.0
        %678 = vmatprep.subr.mxu0 0.0
        %679 = vmatpush1.msra.mxu0 0.0
        %680 = vmatprep.subr.mxu0 0.0
        %681 = vmatpush1.msra.mxu0 0.0
        %682 = vmatprep.subr.mxu0 0.0
        %683 = vmatpush1.msra.mxu0 0.0
        %684 = vmatprep.subr.mxu0 0.0
        %685 = vmatpush1.msra.mxu0 0.0
        %686 = vmatprep.subr.mxu0 0.0
        %687 = vmatpush1.msra.mxu0 0.0
        %688 = vmatprep.subr.mxu0 0.0
        %689 = vmatpush1.msra.mxu0 0.0
        %690 = vmatprep.subr.mxu0 0.0
        %691 = vmatpush1.msra.mxu0 0.0
        %692 = vmatprep.subr.mxu0 0.0
        %693 = vmatpush1.msra.mxu0 0.0
        %694 = vmatprep.subr.mxu0 0.0
        %695 = vmatpush1.msra.mxu0 0.0
        %696 = vmatprep.subr.mxu0 0.0
        %697 = vmatpush1.msra.mxu0 0.0
        %698 = vmatprep.mubr.f32.mxu0 0.0
        %699 = vmatmul.mubr.f32.gmra.mrb[0].mxu0 %v595
        %v700 = vpop.f32.mrb[0].mxu0
        %v701 = vadd.f32 %v632, %v700
        %v702 = vpop.f32.mrb[0].mxu0
        %703 = vmatprep.mubr.f32.mxu0 0.0
        %704 = vmatmul.mubr.f32.gmra.mrb[0].mxu0 %v596
        %v705 = vpop.f32.mrb[0].mxu0
        %v706 = vadd.f32 %v632, %v705
        %v707 = vpop.f32.mrb[0].mxu0
        %708 = vmatprep.mubr.f32.mxu0 0.0
        %709 = vmatmul.mubr.f32.gmra.mrb[0].mxu0 %v597
        %v710 = vpop.f32.mrb[0].mxu0
        %v711 = vadd.f32 %v632, %v710
        %v712 = vpop.f32.mrb[0].mxu0
        %713 = vmatprep.mubr.f32.mxu0 0.0
        %714 = vmatmul.mubr.f32.gmra.mrb[0].mxu0 %v598
        %v715 = vpop.f32.mrb[0].mxu0
        %v716 = vadd.f32 %v632, %v715
        %v717 = vpop.f32.mrb[0].mxu0
        %718 = vmatprep.mubr.f32.mxu0 0.0
        %719 = vmatmul.mubr.f32.gmra.mrb[0].mxu0 %v599
        %v720 = vpop.f32.mrb[0].mxu0
        %v721 = vadd.f32 %v632, %v720
        %v722 = vpop.f32.mrb[0].mxu0
        %723 = vmatprep.mubr.f32.mxu0 0.0
        %724 = vmatmul.mubr.f32.gmra.mrb[0].mxu0 %v600
        %v725 = vpop.f32.mrb[0].mxu0
        %v726 = vadd.f32 %v632, %v725
        %v727 = vpop.f32.mrb[0].mxu0
        %728 = vmatprep.mubr.f32.mxu0 0.0
        %729 = vmatmul.mubr.f32.gmra.mrb[0].mxu0 %v601
        %v730 = vpop.f32.mrb[0].mxu0
        %v731 = vadd.f32 %v632, %v730
        %v732 = vpop.f32.mrb[0].mxu0
        %733 = vmatprep.mubr.f32.mxu0 0.0
        %734 = vmatmul.mubr.f32.gmra.mrb[0].mxu0 %v602
        %v735 = vpop.f32.mrb[0].mxu0
        %v736 = vadd.f32 %v632, %v735
        %v737 = vpop.f32.mrb[0].mxu0
        %738 = vmatprep.mubr.f32.mxu0 0.0
        %739 = vmatmul.mubr.f32.gmra.mrb[0].mxu0 %v603
        %v740 = vpop.f32.mrb[0].mxu0
        %v741 = vadd.f32 %v632, %v740
        %v742 = vpop.f32.mrb[0].mxu0
        %743 = vmatprep.mubr.f32.mxu0 0.0
        %744 = vmatmul.mubr.f32.gmra.mrb[0].mxu0 %v604
        %v745 = vpop.f32.mrb[0].mxu0
        %v746 = vadd.f32 %v632, %v745
        %v747 = vpop.f32.mrb[0].mxu0
        %748 = vmatprep.mubr.f32.mxu0 0.0
        %749 = vmatmul.mubr.f32.gmra.mrb[0].mxu0 %v605
        %v750 = vpop.f32.mrb[0].mxu0
        %v751 = vadd.f32 %v632, %v750
        %v752 = vpop.f32.mrb[0].mxu0
        %753 = vmatprep.mubr.f32.mxu0 0.0
        %754 = vmatmul.mubr.f32.gmra.mrb[0].mxu0 %v606
        %v755 = vpop.f32.mrb[0].mxu0
        %v756 = vadd.f32 %v632, %v755
        %v757 = vpop.f32.mrb[0].mxu0
        %758 = vmatprep.mubr.f32.mxu0 0.0
        %759 = vmatmul.mubr.f32.gmra.mrb[0].mxu0 %v607
        %v760 = vpop.f32.mrb[0].mxu0
        %v761 = vadd.f32 %v632, %v760
        %v762 = vpop.f32.mrb[0].mxu0
        %763 = vmatprep.mubr.f32.mxu0 0.0
        %764 = vmatmul.mubr.f32.gmra.mrb[0].mxu0 %v608
        %v765 = vpop.f32.mrb[0].mxu0
        %v766 = vadd.f32 %v632, %v765
        %v767 = vpop.f32.mrb[0].mxu0
        %768 = vmatprep.mubr.f32.mxu0 0.0
        %769 = vmatmul.mubr.f32.gmra.mrb[0].mxu0 %v609
        %v770 = vpop.f32.mrb[0].mxu0
        %v771 = vadd.f32 %v632, %v770
        %v772 = vpop.f32.mrb[0].mxu0
        %773 = vmatprep.mubr.f32.mxu0 0.0
        %774 = vmatmul.mubr.f32.gmra.mrb[0].mxu0 %v610
        %v775 = vpop.f32.mrb[0].mxu0
        %v776 = vadd.f32 %v632, %v775
        %v777 = vpop.f32.mrb[0].mxu0
        %778 = vdwg.mxu0
        %v779 = vtanh.pop %v701
        %v780 = vtanh.pop %v706
        %v781 = vtanh.pop %v711
        %v782 = vtanh.pop %v716
        %v783 = vtanh.pop %v721
        %v784 = vtanh.pop %v726
        %v785 = vtanh.pop %v731
        %v786 = vtanh.pop %v736
        %v787 = vtanh.pop %v741
        %v788 = vtanh.pop %v746
        %v789 = vtanh.pop %v751
        %v790 = vtanh.pop %v756
        %v791 = vtanh.pop %v761
        %v792 = vtanh.pop %v766
        %v793 = vtanh.pop %v771
        %v794 = vtanh.pop %v776
        %v795 = vld [vmem:[#allocation8] sm:$0xff]
        %v796 = vld [vmem:[#allocation8 + $0x8] sm:$0xff]
        %v797 = vld [vmem:[#allocation8 + $0x10] sm:$0xff]
        %v798 = vld [vmem:[#allocation8 + $0x18] sm:$0xff]
        %v799 = vld [vmem:[#allocation8 + $0x20] sm:$0xff]
        %v800 = vld [vmem:[#allocation8 + $0x28] sm:$0xff]
        %v801 = vld [vmem:[#allocation8 + $0x30] sm:$0xff]
        %v802 = vld [vmem:[#allocation8 + $0x38] sm:$0xff]
        %v803 = vld [vmem:[#allocation8 + $0x40] sm:$0xff]
        %v804 = vld [vmem:[#allocation8 + $0x48] sm:$0xff]
        %v805 = vld [vmem:[#allocation8 + $0x50] sm:$0xff]
        %v806 = vld [vmem:[#allocation8 + $0x58] sm:$0xff]
        %v807 = vld [vmem:[#allocation8 + $0x60] sm:$0xff]
        %v808 = vld [vmem:[#allocation8 + $0x68] sm:$0xff]
        %v809 = vld [vmem:[#allocation8 + $0x70] sm:$0xff]
        %v810 = vld [vmem:[#allocation8 + $0x78] sm:$0xff]
        %v811 = vld [vmem:[%s6] sm:$0x1]
        %v813 = vlaneseq
        %v814 = vshrl.u32 %v813, 7
        %v815 = vsub.s32 0, %v814
        %v816 = vrot.slane %v811, %v815
        %818 = vmatprep.subr.mxu0 0.0
        %819 = vmatpush1.msra.mxu0 %v795
        %820 = vmatprep.subr.mxu0 0.0
        %821 = vmatpush1.msra.mxu0 %v796
        %822 = vmatprep.subr.mxu0 0.0
        %823 = vmatpush1.msra.mxu0 %v797
        %824 = vmatprep.subr.mxu0 0.0
        %825 = vmatpush1.msra.mxu0 %v798
        %826 = vmatprep.subr.mxu0 0.0
        %827 = vmatpush1.msra.mxu0 %v799
        %828 = vmatprep.subr.mxu0 0.0
        %829 = vmatpush1.msra.mxu0 %v800
        %830 = vmatprep.subr.mxu0 0.0
        %831 = vmatpush1.msra.mxu0 %v801
        %832 = vmatprep.subr.mxu0 0.0
        %833 = vmatpush1.msra.mxu0 %v802
        %834 = vmatprep.subr.mxu0 0.0
        %835 = vmatpush1.msra.mxu0 %v803
        %836 = vmatprep.subr.mxu0 0.0
        %837 = vmatpush1.msra.mxu0 %v804
        %838 = vmatprep.subr.mxu0 0.0
        %839 = vmatpush1.msra.mxu0 %v805
        %840 = vmatprep.subr.mxu0 0.0
        %841 = vmatpush1.msra.mxu0 %v806
        %842 = vmatprep.subr.mxu0 0.0
        %843 = vmatpush1.msra.mxu0 %v807
        %844 = vmatprep.subr.mxu0 0.0
        %845 = vmatpush1.msra.mxu0 %v808
        %846 = vmatprep.subr.mxu0 0.0
        %847 = vmatpush1.msra.mxu0 %v809
        %848 = vmatprep.subr.mxu0 0.0
        %849 = vmatpush1.msra.mxu0 %v810
        %850 = vmatprep.subr.mxu0 0.0
        %851 = vmatpush1.msra.mxu0 0.0
        %852 = vmatprep.subr.mxu0 0.0
        %853 = vmatpush1.msra.mxu0 0.0
        %854 = vmatprep.subr.mxu0 0.0
        %855 = vmatpush1.msra.mxu0 0.0
        %856 = vmatprep.subr.mxu0 0.0
        %857 = vmatpush1.msra.mxu0 0.0
        %858 = vmatprep.subr.mxu0 0.0
        %859 = vmatpush1.msra.mxu0 0.0
        %860 = vmatprep.subr.mxu0 0.0
        %861 = vmatpush1.msra.mxu0 0.0
        %862 = vmatprep.subr.mxu0 0.0
        %863 = vmatpush1.msra.mxu0 0.0
        %864 = vmatprep.subr.mxu0 0.0
        %865 = vmatpush1.msra.mxu0 0.0
        %866 = vmatprep.subr.mxu0 0.0
        %867 = vmatpush1.msra.mxu0 0.0
        %868 = vmatprep.subr.mxu0 0.0
        %869 = vmatpush1.msra.mxu0 0.0
        %870 = vmatprep.subr.mxu0 0.0
        %871 = vmatpush1.msra.mxu0 0.0
        %872 = vmatprep.subr.mxu0 0.0
        %873 = vmatpush1.msra.mxu0 0.0
        %874 = vmatprep.subr.mxu0 0.0
        %875 = vmatpush1.msra.mxu0 0.0
        %876 = vmatprep.subr.mxu0 0.0
        %877 = vmatpush1.msra.mxu0 0.0
        %878 = vmatprep.subr.mxu0 0.0
        %879 = vmatpush1.msra.mxu0 0.0
        %880 = vmatprep.subr.mxu0 0.0
        %881 = vmatpush1.msra.mxu0 0.0
        %882 = vmatprep.mubr.f32.mxu0 0.0
        %883 = vmatmul.mubr.f32.gmra.mrb[0].mxu0 %v779
        %v884 = vpop.f32.mrb[0].mxu0
        %v885 = vadd.f32 %v816, %v884
        %v886 = vpop.f32.mrb[0].mxu0
        %887 = vmatprep.mubr.f32.mxu0 0.0
        %888 = vmatmul.mubr.f32.gmra.mrb[0].mxu0 %v780
        %v889 = vpop.f32.mrb[0].mxu0
        %v890 = vadd.f32 %v816, %v889
        %v891 = vpop.f32.mrb[0].mxu0
        %892 = vmatprep.mubr.f32.mxu0 0.0
        %893 = vmatmul.mubr.f32.gmra.mrb[0].mxu0 %v781
        %v894 = vpop.f32.mrb[0].mxu0
        %v895 = vadd.f32 %v816, %v894
        %v896 = vpop.f32.mrb[0].mxu0
        %897 = vmatprep.mubr.f32.mxu0 0.0
        %898 = vmatmul.mubr.f32.gmra.mrb[0].mxu0 %v782
        %v899 = vpop.f32.mrb[0].mxu0
        %v900 = vadd.f32 %v816, %v899
        %v901 = vpop.f32.mrb[0].mxu0
        %902 = vmatprep.mubr.f32.mxu0 0.0
        %903 = vmatmul.mubr.f32.gmra.mrb[0].mxu0 %v783
        %v904 = vpop.f32.mrb[0].mxu0
        %v905 = vadd.f32 %v816, %v904
        %v906 = vpop.f32.mrb[0].mxu0
        %907 = vmatprep.mubr.f32.mxu0 0.0
        %908 = vmatmul.mubr.f32.gmra.mrb[0].mxu0 %v784
        %v909 = vpop.f32.mrb[0].mxu0
        %v910 = vadd.f32 %v816, %v909
        %v911 = vpop.f32.mrb[0].mxu0
        %912 = vmatprep.mubr.f32.mxu0 0.0
        %913 = vmatmul.mubr.f32.gmra.mrb[0].mxu0 %v785
        %v914 = vpop.f32.mrb[0].mxu0
        %v915 = vadd.f32 %v816, %v914
        %v916 = vpop.f32.mrb[0].mxu0
        %917 = vmatprep.mubr.f32.mxu0 0.0
        %918 = vmatmul.mubr.f32.gmra.mrb[0].mxu0 %v786
        %v919 = vpop.f32.mrb[0].mxu0
        %v920 = vadd.f32 %v816, %v919
        %v921 = vpop.f32.mrb[0].mxu0
        %922 = vmatprep.mubr.f32.mxu0 0.0
        %923 = vmatmul.mubr.f32.gmra.mrb[0].mxu0 %v787
        %v924 = vpop.f32.mrb[0].mxu0
        %v925 = vadd.f32 %v816, %v924
        %v926 = vpop.f32.mrb[0].mxu0
        %927 = vmatprep.mubr.f32.mxu0 0.0
        %928 = vmatmul.mubr.f32.gmra.mrb[0].mxu0 %v788
        %v929 = vpop.f32.mrb[0].mxu0
        %v930 = vadd.f32 %v816, %v929
        %v931 = vpop.f32.mrb[0].mxu0
        %932 = vmatprep.mubr.f32.mxu0 0.0
        %933 = vmatmul.mubr.f32.gmra.mrb[0].mxu0 %v789
        %v934 = vpop.f32.mrb[0].mxu0
        %v935 = vadd.f32 %v816, %v934
        %v936 = vpop.f32.mrb[0].mxu0
        %937 = vmatprep.mubr.f32.mxu0 0.0
        %938 = vmatmul.mubr.f32.gmra.mrb[0].mxu0 %v790
        %v939 = vpop.f32.mrb[0].mxu0
        %v940 = vadd.f32 %v816, %v939
        %v941 = vpop.f32.mrb[0].mxu0
        %942 = vmatprep.mubr.f32.mxu0 0.0
        %943 = vmatmul.mubr.f32.gmra.mrb[0].mxu0 %v791
        %v944 = vpop.f32.mrb[0].mxu0
        %v945 = vadd.f32 %v816, %v944
        %v946 = vpop.f32.mrb[0].mxu0
        %947 = vmatprep.mubr.f32.mxu0 0.0
        %948 = vmatmul.mubr.f32.gmra.mrb[0].mxu0 %v792
        %v949 = vpop.f32.mrb[0].mxu0
        %v950 = vadd.f32 %v816, %v949
        %v951 = vpop.f32.mrb[0].mxu0
        %952 = vmatprep.mubr.f32.mxu0 0.0
        %953 = vmatmul.mubr.f32.gmra.mrb[0].mxu0 %v793
        %v954 = vpop.f32.mrb[0].mxu0
        %v955 = vadd.f32 %v816, %v954
        %v956 = vpop.f32.mrb[0].mxu0
        %957 = vmatprep.mubr.f32.mxu0 0.0
        %958 = vmatmul.mubr.f32.gmra.mrb[0].mxu0 %v794
        %v959 = vpop.f32.mrb[0].mxu0
        %v960 = vadd.f32 %v816, %v959
        %v961 = vpop.f32.mrb[0].mxu0
        %962 = vdwg.mxu0
        %v963 = vtanh.pop %v885
        %v964 = vtanh.pop %v890
        %v965 = vtanh.pop %v895
        %v966 = vtanh.pop %v900
        %v967 = vtanh.pop %v905
        %v968 = vtanh.pop %v910
        %v969 = vtanh.pop %v915
        %v970 = vtanh.pop %v920
        %v971 = vtanh.pop %v925
        %v972 = vtanh.pop %v930
        %v973 = vtanh.pop %v935
        %v974 = vtanh.pop %v940
        %v975 = vtanh.pop %v945
        %v976 = vtanh.pop %v950
        %v977 = vtanh.pop %v955
        %v978 = vtanh.pop %v960
        %v979 = vld [vmem:[#allocation10] sm:$0xff]
        %v980 = vld [vmem:[#allocation10 + $0x8] sm:$0xff]
        %v981 = vld [vmem:[#allocation10 + $0x10] sm:$0xff]
        %v982 = vld [vmem:[#allocation10 + $0x18] sm:$0xff]
        %v983 = vld [vmem:[#allocation10 + $0x20] sm:$0xff]
        %v984 = vld [vmem:[#allocation10 + $0x28] sm:$0xff]
        %v985 = vld [vmem:[#allocation10 + $0x30] sm:$0xff]
        %v986 = vld [vmem:[#allocation10 + $0x38] sm:$0xff]
        %v987 = vld [vmem:[#allocation10 + $0x40] sm:$0xff]
        %v988 = vld [vmem:[#allocation10 + $0x48] sm:$0xff]
        %v989 = vld [vmem:[#allocation10 + $0x50] sm:$0xff]
        %v990 = vld [vmem:[#allocation10 + $0x58] sm:$0xff]
        %v991 = vld [vmem:[#allocation10 + $0x60] sm:$0xff]
        %v992 = vld [vmem:[#allocation10 + $0x68] sm:$0xff]
        %v993 = vld [vmem:[#allocation10 + $0x70] sm:$0xff]
        %v994 = vld [vmem:[#allocation10 + $0x78] sm:$0xff]
        %v995 = vld [vmem:[%s8] sm:$0x1]
        %v997 = vlaneseq
        %v998 = vshrl.u32 %v997, 7
        %v999 = vsub.s32 0, %v998
        %v1000 = vrot.slane %v995, %v999
        %1002 = vmatprep.subr.mxu0 0.0
        %1003 = vmatpush1.msra.mxu0 %v979
        %1004 = vmatprep.subr.mxu0 0.0
        %1005 = vmatpush1.msra.mxu0 %v980
        %1006 = vmatprep.subr.mxu0 0.0
        %1007 = vmatpush1.msra.mxu0 %v981
        %1008 = vmatprep.subr.mxu0 0.0
        %1009 = vmatpush1.msra.mxu0 %v982
        %1010 = vmatprep.subr.mxu0 0.0
        %1011 = vmatpush1.msra.mxu0 %v983
        %1012 = vmatprep.subr.mxu0 0.0
        %1013 = vmatpush1.msra.mxu0 %v984
        %1014 = vmatprep.subr.mxu0 0.0
        %1015 = vmatpush1.msra.mxu0 %v985
        %1016 = vmatprep.subr.mxu0 0.0
        %1017 = vmatpush1.msra.mxu0 %v986
        %1018 = vmatprep.subr.mxu0 0.0
        %1019 = vmatpush1.msra.mxu0 %v987
        %1020 = vmatprep.subr.mxu0 0.0
        %1021 = vmatpush1.msra.mxu0 %v988
        %1022 = vmatprep.subr.mxu0 0.0
        %1023 = vmatpush1.msra.mxu0 %v989
        %1024 = vmatprep.subr.mxu0 0.0
        %1025 = vmatpush1.msra.mxu0 %v990
        %1026 = vmatprep.subr.mxu0 0.0
        %1027 = vmatpush1.msra.mxu0 %v991
        %1028 = vmatprep.subr.mxu0 0.0
        %1029 = vmatpush1.msra.mxu0 %v992
        %1030 = vmatprep.subr.mxu0 0.0
        %1031 = vmatpush1.msra.mxu0 %v993
        %1032 = vmatprep.subr.mxu0 0.0
        %1033 = vmatpush1.msra.mxu0 %v994
        %1034 = vmatprep.subr.mxu0 0.0
        %1035 = vmatpush1.msra.mxu0 0.0
        %1036 = vmatprep.subr.mxu0 0.0
        %1037 = vmatpush1.msra.mxu0 0.0
        %1038 = vmatprep.subr.mxu0 0.0
        %1039 = vmatpush1.msra.mxu0 0.0
        %1040 = vmatprep.subr.mxu0 0.0
        %1041 = vmatpush1.msra.mxu0 0.0
        %1042 = vmatprep.subr.mxu0 0.0
        %1043 = vmatpush1.msra.mxu0 0.0
        %1044 = vmatprep.subr.mxu0 0.0
        %1045 = vmatpush1.msra.mxu0 0.0
        %1046 = vmatprep.subr.mxu0 0.0
        %1047 = vmatpush1.msra.mxu0 0.0
        %1048 = vmatprep.subr.mxu0 0.0
        %1049 = vmatpush1.msra.mxu0 0.0
        %1050 = vmatprep.subr.mxu0 0.0
        %1051 = vmatpush1.msra.mxu0 0.0
        %1052 = vmatprep.subr.mxu0 0.0
        %1053 = vmatpush1.msra.mxu0 0.0
        %1054 = vmatprep.subr.mxu0 0.0
        %1055 = vmatpush1.msra.mxu0 0.0
        %1056 = vmatprep.subr.mxu0 0.0
        %1057 = vmatpush1.msra.mxu0 0.0
        %1058 = vmatprep.subr.mxu0 0.0
        %1059 = vmatpush1.msra.mxu0 0.0
        %1060 = vmatprep.subr.mxu0 0.0
        %1061 = vmatpush1.msra.mxu0 0.0
        %1062 = vmatprep.subr.mxu0 0.0
        %1063 = vmatpush1.msra.mxu0 0.0
        %1064 = vmatprep.subr.mxu0 0.0
        %1065 = vmatpush1.msra.mxu0 0.0
        %1066 = vmatprep.mubr.f32.mxu0 0.0
        %1067 = vmatmul.mubr.f32.gmra.mrb[0].mxu0 %v963
        %v1068 = vpop.f32.mrb[0].mxu0
        %v1069 = vadd.f32 %v1000, %v1068
        %v1070 = vpop.f32.mrb[0].mxu0
        %1071 = vmatprep.mubr.f32.mxu0 0.0
        %1072 = vmatmul.mubr.f32.gmra.mrb[0].mxu0 %v964
        %v1073 = vpop.f32.mrb[0].mxu0
        %v1074 = vadd.f32 %v1000, %v1073
        %v1075 = vpop.f32.mrb[0].mxu0
        %1076 = vmatprep.mubr.f32.mxu0 0.0
        %1077 = vmatmul.mubr.f32.gmra.mrb[0].mxu0 %v965
        %v1078 = vpop.f32.mrb[0].mxu0
        %v1079 = vadd.f32 %v1000, %v1078
        %v1080 = vpop.f32.mrb[0].mxu0
        %1081 = vmatprep.mubr.f32.mxu0 0.0
        %1082 = vmatmul.mubr.f32.gmra.mrb[0].mxu0 %v966
        %v1083 = vpop.f32.mrb[0].mxu0
        %v1084 = vadd.f32 %v1000, %v1083
        %v1085 = vpop.f32.mrb[0].mxu0
        %1086 = vmatprep.mubr.f32.mxu0 0.0
        %1087 = vmatmul.mubr.f32.gmra.mrb[0].mxu0 %v967
        %v1088 = vpop.f32.mrb[0].mxu0
        %v1089 = vadd.f32 %v1000, %v1088
        %v1090 = vpop.f32.mrb[0].mxu0
        %1091 = vmatprep.mubr.f32.mxu0 0.0
        %1092 = vmatmul.mubr.f32.gmra.mrb[0].mxu0 %v968
        %v1093 = vpop.f32.mrb[0].mxu0
        %v1094 = vadd.f32 %v1000, %v1093
        %v1095 = vpop.f32.mrb[0].mxu0
        %1096 = vmatprep.mubr.f32.mxu0 0.0
        %1097 = vmatmul.mubr.f32.gmra.mrb[0].mxu0 %v969
        %v1098 = vpop.f32.mrb[0].mxu0
        %v1099 = vadd.f32 %v1000, %v1098
        %v1100 = vpop.f32.mrb[0].mxu0
        %1101 = vmatprep.mubr.f32.mxu0 0.0
        %1102 = vmatmul.mubr.f32.gmra.mrb[0].mxu0 %v970
        %v1103 = vpop.f32.mrb[0].mxu0
        %v1104 = vadd.f32 %v1000, %v1103
        %v1105 = vpop.f32.mrb[0].mxu0
        %1106 = vmatprep.mubr.f32.mxu0 0.0
        %1107 = vmatmul.mubr.f32.gmra.mrb[0].mxu0 %v971
        %v1108 = vpop.f32.mrb[0].mxu0
        %v1109 = vadd.f32 %v1000, %v1108
        %v1110 = vpop.f32.mrb[0].mxu0
        %1111 = vmatprep.mubr.f32.mxu0 0.0
        %1112 = vmatmul.mubr.f32.gmra.mrb[0].mxu0 %v972
        %v1113 = vpop.f32.mrb[0].mxu0
        %v1114 = vadd.f32 %v1000, %v1113
        %v1115 = vpop.f32.mrb[0].mxu0
        %1116 = vmatprep.mubr.f32.mxu0 0.0
        %1117 = vmatmul.mubr.f32.gmra.mrb[0].mxu0 %v973
        %v1118 = vpop.f32.mrb[0].mxu0
        %v1119 = vadd.f32 %v1000, %v1118
        %v1120 = vpop.f32.mrb[0].mxu0
        %1121 = vmatprep.mubr.f32.mxu0 0.0
        %1122 = vmatmul.mubr.f32.gmra.mrb[0].mxu0 %v974
        %v1123 = vpop.f32.mrb[0].mxu0
        %v1124 = vadd.f32 %v1000, %v1123
        %v1125 = vpop.f32.mrb[0].mxu0
        %1126 = vmatprep.mubr.f32.mxu0 0.0
        %1127 = vmatmul.mubr.f32.gmra.mrb[0].mxu0 %v975
        %v1128 = vpop.f32.mrb[0].mxu0
        %v1129 = vadd.f32 %v1000, %v1128
        %v1130 = vpop.f32.mrb[0].mxu0
        %1131 = vmatprep.mubr.f32.mxu0 0.0
        %1132 = vmatmul.mubr.f32.gmra.mrb[0].mxu0 %v976
        %v1133 = vpop.f32.mrb[0].mxu0
        %v1134 = vadd.f32 %v1000, %v1133
        %v1135 = vpop.f32.mrb[0].mxu0
        %1136 = vmatprep.mubr.f32.mxu0 0.0
        %1137 = vmatmul.mubr.f32.gmra.mrb[0].mxu0 %v977
        %v1138 = vpop.f32.mrb[0].mxu0
        %v1139 = vadd.f32 %v1000, %v1138
        %v1140 = vpop.f32.mrb[0].mxu0
        %1141 = vmatprep.mubr.f32.mxu0 0.0
        %1142 = vmatmul.mubr.f32.gmra.mrb[0].mxu0 %v978
        %v1143 = vpop.f32.mrb[0].mxu0
        %v1144 = vadd.f32 %v1000, %v1143
        %v1145 = vpop.f32.mrb[0].mxu0
        %1146 = vdwg.mxu0
        %1147 = vst [vmem:[%s408] sm:$0xff] %v1069
        %1148 = vst [vmem:[%s408 + $0x8] sm:$0xff] %v1074
        %1149 = vst [vmem:[%s408 + $0x10] sm:$0xff] %v1079
        %1150 = vst [vmem:[%s408 + $0x18] sm:$0xff] %v1084
        %1151 = vst [vmem:[%s408 + $0x20] sm:$0xff] %v1089
        %1152 = vst [vmem:[%s408 + $0x28] sm:$0xff] %v1094
        %1153 = vst [vmem:[%s408 + $0x30] sm:$0xff] %v1099
        %1154 = vst [vmem:[%s408 + $0x38] sm:$0xff] %v1104
        %1155 = vst [vmem:[%s408 + $0x40] sm:$0xff] %v1109
        %1156 = vst [vmem:[%s408 + $0x48] sm:$0xff] %v1114
        %1157 = vst [vmem:[%s408 + $0x50] sm:$0xff] %v1119
        %1158 = vst [vmem:[%s408 + $0x58] sm:$0xff] %v1124
        %1159 = vst [vmem:[%s408 + $0x60] sm:$0xff] %v1129
        %1160 = vst [vmem:[%s408 + $0x68] sm:$0xff] %v1134
        %1161 = vst [vmem:[%s408 + $0x70] sm:$0xff] %v1139
        %1162 = vst [vmem:[%s408 + $0x78] sm:$0xff] %v1144
        %s1163 = sand.u32 %s230, 1
        %s1164 = scalar_lea.sflag [#allocation4], %s1163
        %s1165 = sand.u32 %s230, 1
        %s1166 = smul.addr %s1165, 128
        %s1167 = scalar_lea.vmem [#allocation11], %s1166
        // Predicated region
        $region77: #{tpu_custom_call.1} parent=55 // pred_check
          %p1168 = pneg %p240
        $region78: #{tpu_custom_call.1} parent=55 // pred_check_branch
          %1170 = sbr.rel (%p1168) target = $region80
        $region79: #{tpu_custom_call.1} parent=55 // pred_region
          %s1171 = smul.u32 16, %s28
          %s1173 = ssub.s32 2048, 2048
          %1174 = vsyncadd %s1164, %s1173
          %s1175 = smul.addr %s1171, 128
          %s1176 = scalar_lea.hbm %s9, %s1175
          %s1177 = sshll.u32 %s1167, 4
          %s1178 = int_to_ptr.vmem [resolvable:$true] %s1177
          %1183 = dma.vmem_to_hbm [thread:$0]  %s1178, 2048, %s1176, %s1164, 128, 128, 8
        $region80: #{tpu_custom_call.1} parent=55 // pred_fallthru
          _
      $region56: #{tpu_custom_call.1} parent=5 // pred_fallthru
        _
      %p1184 = scmp.le.s32.totalorder 2, %s23
      // Predicated region
      $region81: #{tpu_custom_call.1} parent=5 // pred_check
        %p1185 = pneg %p1184
      $region82: #{tpu_custom_call.1} parent=5 // pred_check_branch
        %1187 = sbr.rel (%p1185) target = $region84
      $region83: #{tpu_custom_call.1} parent=5 // pred_region
        %s1188 = ssub.s32 %s23, 2
        // Predicated region
        $region85: #{tpu_custom_call.1} parent=83 // pred_check
          %p1189 = pneg %p246
        $region86: #{tpu_custom_call.1} parent=83 // pred_check_branch
          %1191 = sbr.rel (%p1189) target = $region88
        $region87: #{tpu_custom_call.1} parent=83 // pred_region
          %s1192 = sand.u32 %s231, 1
          %s1193 = scalar_lea.sflag [#allocation4], %s1192
          %s1194 = sand.u32 %s231, 1
          %s1195 = smul.addr %s1194, 128
          %s1196 = scalar_lea.vmem [#allocation11], %s1195
          %1197 = dma.done %s1193, 2048
        $region88: #{tpu_custom_call.1} parent=83 // pred_fallthru
          _
      $region84: #{tpu_custom_call.1} parent=5 // pred_fallthru
        _
    $region6: #{tpu_custom_call.1} parent=1 // loop_footer
      %s27 = sadd.s32 1, %s23
    $region7: #{tpu_custom_call.1} parent=1 // loop_footer_branch
      %22 = sbr.rel target = $region3
    $region8: #{tpu_custom_call.1} parent=1 // loop_exit
      _
    %1198 = vsyncpa [#allocation3], 1
    %s1199 = scalar_lea.sflag [#allocation3], 1
    %1200 = vsyncpa %s1199, 1
    %1201 = vsyncpa [#allocation6], 1
    %1202 = vsyncpa [#allocation9], 1
    %1203 = vsyncpa [#allocation4], 1
    %s1204 = scalar_lea.sflag [#allocation4], 1
    %1205 = vsyncpa %s1204, 1

// kernel: tpu_custom_call.1
$region0: #{tpu_custom_call.1}
  #allocation0 [shape = 'u32[]', space=smem, size = 0x4, offset = 0x4, fixed_abs, tag = 'smem constant byte address 0x4 - core index']
  #allocation1 [shape = 'u32[144,128]{1,0:T(1,128)}', space=vmem, size = 0x12000, scoped, tag = 'internal scratch']
  %s0 = inlined_call_operand.hbm [shape: f32[256,128], index: 0, kind: input, shape index: {}]
  %s1 = inlined_call_operand.hbm [shape: f32[128,128], index: 1, kind: input, shape index: {}]
  %s2 = inlined_call_operand.vmem [shape: f32[1,128], index: 2, kind: input, shape index: {}]
  %s3 = inlined_call_operand.hbm [shape: f32[128,128], index: 3, kind: input, shape index: {}]
  %s4 = inlined_call_operand.vmem [shape: f32[1,128], index: 4, kind: input, shape index: {}]
  %s5 = inlined_call_operand.hbm [shape: f32[128,128], index: 5, kind: input, shape index: {}]
  %s6 = inlined_call_operand.vmem [shape: f32[1,128], index: 6, kind: input, shape index: {}]
  %s7 = inlined_call_operand.hbm [shape: f32[128,128], index: 7, kind: input, shape index: {}]
  %s8 = inlined_call_operand.vmem [shape: f32[1,128], index: 8, kind: input, shape index: {}]
  %s9 = inlined_call_operand.hbm [shape: f32[256,128], index: 9, kind: output, shape index: {}]
  %s10 = sld [smem:[#allocation0]]
  $region89: #{tpu_custom_call.1} parent=0
    _
  %s12 = ssub.s32 1, %s10
  %s13 = scalar_select 0, %s12, %s10
  $region1: #{tpu_custom_call.1} parent=0
    #allocation2 [shape = 'u8[131072]{0}', space=vmem, size = 0x20000, scoped, tag = 'input window, operand 0']
    #allocation3 [shape = 's32[2]{0}', space=sflag, size = 0x8, scoped, tag = 'scoped memory for tpu_custom_call.1']
    #allocation4 [shape = 's32[2]{0}', space=sflag, size = 0x8, scoped, tag = 'scoped memory for tpu_custom_call.1']
    #allocation5 [shape = 'u8[65536]{0}', space=vmem, size = 0x10000, scoped, tag = 'input window, operand 1, single buffered']
    #allocation6 [shape = 's32[1]{0}', space=sflag, size = 0x4, scoped, tag = 'scoped memory for tpu_custom_call.1']
    #allocation7 [shape = 'u8[65536]{0}', space=vmem, size = 0x10000, scoped, tag = 'input window, operand 3, single buffered']
    #allocation8 [shape = 'u8[65536]{0}', space=vmem, size = 0x10000, scoped, tag = 'input window, operand 5, single buffered']
    #allocation9 [shape = 's32[1]{0}', space=sflag, size = 0x4, scoped, tag = 'scoped memory for tpu_custom_call.1']
    #allocation10 [shape = 'u8[65536]{0}', space=vmem, size = 0x10000, scoped, tag = 'input window, operand 7, single buffered']
    #allocation11 [shape = 'u8[131072]{0}', space=vmem, size = 0x20000, scoped, tag = 'output window, operand 0']
    %14 = vsyncpa [#allocation3], 0
    %s15 = scalar_lea.sflag [#allocation3], 1
    %16 = vsyncpa %s15, 0
    %17 = vsyncpa [#allocation6], 0
    %18 = vsyncpa [#allocation9], 0
    %19 = vsyncpa [#allocation4], 0
    %s20 = scalar_lea.sflag [#allocation4], 1
    %21 = vsyncpa %s20, 0
    loop: start=0, step=1, limit=4
    $region2: #{tpu_custom_call.1} parent=1 // loop_pre_header
      _
    $region3: #{tpu_custom_call.1} parent=1 // loop_header
      %s23 = sphi 0, %s27
      %p24 = scmp.ge.s32.totalorder %s23, 4
      %s33 = sphi 0, %s35
      %s36 = sphi 0, %s33
      %s37 = sphi 0, %s36
      %s53 = sphi 0, %s37
      %s57 = sphi 0, %s57
      %s59 = sphi 0, %s57
      %s60 = sphi 0, %s59
      %s74 = sphi 0, %s60
      %s78 = sphi 0, %s78
      %s80 = sphi 0, %s78
      %s81 = sphi 0, %s80
      %s95 = sphi 0, %s81
      %s99 = sphi 0, %s99
      %s101 = sphi 0, %s99
      %s102 = sphi 0, %s101
      %s116 = sphi 0, %s102
      %s120 = sphi 0, %s120
      %s122 = sphi 0, %s120
      %s123 = sphi 0, %s122
      %s137 = sphi 0, %s123
      %s141 = sphi 0, %s141
      %s143 = sphi 0, %s141
      %s144 = sphi 0, %s143
      %s158 = sphi 0, %s144
      %s162 = sphi 0, %s162
      %s164 = sphi 0, %s162
      %s165 = sphi 0, %s164
      %s179 = sphi 0, %s165
      %s183 = sphi 0, %s183
      %s185 = sphi 0, %s183
      %s186 = sphi 0, %s185
      %s200 = sphi 0, %s186
      %s204 = sphi 0, %s204
      %s206 = sphi 0, %s204
      %s207 = sphi 0, %s206
      %s221 = sphi 0, %s207
      %s227 = sphi 0, %s229
      %s230 = sphi 0, %s227
      %s231 = sphi 0, %s230
      %s247 = sphi 0, %s231
    $region4: #{tpu_custom_call.1} parent=1 // loop_header_branch
      %26 = sbr.rel (%p24) target = $region8
    $region5: #{tpu_custom_call.1} parent=1 // loop_body
      %s28 = ssub.s32 %s23, 1
      %s29 = ssub.s32 %s23, 2
      %s30 = sadd.s32 %s23, 1
      %s31 = ssub.s32 %s23, %s30
      %p32 = scmp.eq.s32.totalorder %s31, 0
      %s34 = sadd.s32 %s33, 1
      %s35 = scalar_select %p32, %s33, %s34
      %p38 = pneg %p32
      %p39 = scmp.eq.s32.totalorder %s23, 1
      %p40 = por %p38, %p39
      %p41 = scmp.ne.s32.totalorder %s33, %s36
      %p42 = scmp.eq.s32.totalorder %s23, 0
      %p43 = por %p41, %p42
      %p44 = scmp.ne.s32.totalorder %s33, %s36
      %p45 = scmp.eq.s32.totalorder %s28, 1
      %p46 = por %p44, %p45
      %p47 = scmp.ne.s32.totalorder %s36, %s37
      %p48 = scmp.eq.s32.totalorder %s28, 0
      %p49 = por %p47, %p48
      %p50 = scmp.ne.s32.totalorder %s36, %s37
      %p51 = scmp.eq.s32.totalorder %s29, 1
      %p52 = por %p50, %p51
      %p54 = scmp.ne.s32.totalorder %s37, %s53
      %p55 = scmp.eq.s32.totalorder %s29, 0
      %p56 = por %p54, %p55
      %s58 = sadd.s32 %s57, 1
      %p61 = scmp.eq.s32.totalorder %s23, 1
      %p62 = scmp.ne.s32.totalorder %s57, %s59
      %p63 = scmp.eq.s32.totalorder %s23, 0
      %p64 = por %p62, %p63
      %p65 = scmp.ne.s32.totalorder %s57, %s59
      %p66 = scmp.eq.s32.totalorder %s28, 1
      %p67 = por %p65, %p66
      %p68 = scmp.ne.s32.totalorder %s59, %s60
      %p69 = scmp.eq.s32.totalorder %s28, 0
      %p70 = por %p68, %p69
      %p71 = scmp.ne.s32.totalorder %s59, %s60
      %p72 = scmp.eq.s32.totalorder %s29, 1
      %p73 = por %p71, %p72
      %p75 = scmp.ne.s32.totalorder %s60, %s74
      %p76 = scmp.eq.s32.totalorder %s29, 0
      %p77 = por %p75, %p76
      %s79 = sadd.s32 %s78, 1
      %p82 = scmp.eq.s32.totalorder %s23, 1
      %p83 = scmp.ne.s32.totalorder %s78, %s80
      %p84 = scmp.eq.s32.totalorder %s23, 0
      %p85 = por %p83, %p84
      %p86 = scmp.ne.s32.totalorder %s78, %s80
      %p87 = scmp.eq.s32.totalorder %s28, 1
      %p88 = por %p86, %p87
      %p89 = scmp.ne.s32.totalorder %s80, %s81
      %p90 = scmp.eq.s32.totalorder %s28, 0
      %p91 = por %p89, %p90
      %p92 = scmp.ne.s32.totalorder %s80, %s81
      %p93 = scmp.eq.s32.totalorder %s29, 1
      %p94 = por %p92, %p93
      %p96 = scmp.ne.s32.totalorder %s81, %s95
      %p97 = scmp.eq.s32.totalorder %s29, 0
      %p98 = por %p96, %p97
      %s100 = sadd.s32 %s99, 1
      %p103 = scmp.eq.s32.totalorder %s23, 1
      %p104 = scmp.ne.s32.totalorder %s99, %s101
      %p105 = scmp.eq.s32.totalorder %s23, 0
      %p106 = por %p104, %p105
      %p107 = scmp.ne.s32.totalorder %s99, %s101
      %p108 = scmp.eq.s32.totalorder %s28, 1
      %p109 = por %p107, %p108
      %p110 = scmp.ne.s32.totalorder %s101, %s102
      %p111 = scmp.eq.s32.totalorder %s28, 0
      %p112 = por %p110, %p111
      %p113 = scmp.ne.s32.totalorder %s101, %s102
      %p114 = scmp.eq.s32.totalorder %s29, 1
      %p115 = por %p113, %p114
      %p117 = scmp.ne.s32.totalorder %s102, %s116
      %p118 = scmp.eq.s32.totalorder %s29, 0
      %p119 = por %p117, %p118
      %s121 = sadd.s32 %s120, 1
      %p124 = scmp.eq.s32.totalorder %s23, 1
      %p125 = scmp.ne.s32.totalorder %s120, %s122
      %p126 = scmp.eq.s32.totalorder %s23, 0
      %p127 = por %p125, %p126
      %p128 = scmp.ne.s32.totalorder %s120, %s122
      %p129 = scmp.eq.s32.totalorder %s28, 1
      %p130 = por %p128, %p129
      %p131 = scmp.ne.s32.totalorder %s122, %s123
      %p132 = scmp.eq.s32.totalorder %s28, 0
      %p133 = por %p131, %p132
      %p134 = scmp.ne.s32.totalorder %s122, %s123
      %p135 = scmp.eq.s32.totalorder %s29, 1
      %p136 = por %p134, %p135
      %p138 = scmp.ne.s32.totalorder %s123, %s137
      %p139 = scmp.eq.s32.totalorder %s29, 0
      %p140 = por %p138, %p139
      %s142 = sadd.s32 %s141, 1
      %p145 = scmp.eq.s32.totalorder %s23, 1
      %p146 = scmp.ne.s32.totalorder %s141, %s143
      %p147 = scmp.eq.s32.totalorder %s23, 0
      %p148 = por %p146, %p147
      %p149 = scmp.ne.s32.totalorder %s141, %s143
      %p150 = scmp.eq.s32.totalorder %s28, 1
      %p151 = por %p149, %p150
      %p152 = scmp.ne.s32.totalorder %s143, %s144
      %p153 = scmp.eq.s32.totalorder %s28, 0
      %p154 = por %p152, %p153
      %p155 = scmp.ne.s32.totalorder %s143, %s144
      %p156 = scmp.eq.s32.totalorder %s29, 1
      %p157 = por %p155, %p156
      %p159 = scmp.ne.s32.totalorder %s144, %s158
      %p160 = scmp.eq.s32.totalorder %s29, 0
      %p161 = por %p159, %p160
      %s163 = sadd.s32 %s162, 1
      %p166 = scmp.eq.s32.totalorder %s23, 1
      %p167 = scmp.ne.s32.totalorder %s162, %s164
      %p168 = scmp.eq.s32.totalorder %s23, 0
      %p169 = por %p167, %p168
      %p170 = scmp.ne.s32.totalorder %s162, %s164
      %p171 = scmp.eq.s32.totalorder %s28, 1
      %p172 = por %p170, %p171
      %p173 = scmp.ne.s32.totalorder %s164, %s165
      %p174 = scmp.eq.s32.totalorder %s28, 0
      %p175 = por %p173, %p174
      %p176 = scmp.ne.s32.totalorder %s164, %s165
      %p177 = scmp.eq.s32.totalorder %s29, 1
      %p178 = por %p176, %p177
      %p180 = scmp.ne.s32.totalorder %s165, %s179
      %p181 = scmp.eq.s32.totalorder %s29, 0
      %p182 = por %p180, %p181
      %s184 = sadd.s32 %s183, 1
      %p187 = scmp.eq.s32.totalorder %s23, 1
      %p188 = scmp.ne.s32.totalorder %s183, %s185
      %p189 = scmp.eq.s32.totalorder %s23, 0
      %p190 = por %p188, %p189
      %p191 = scmp.ne.s32.totalorder %s183, %s185
      %p192 = scmp.eq.s32.totalorder %s28, 1
      %p193 = por %p191, %p192
      %p194 = scmp.ne.s32.totalorder %s185, %s186
      %p195 = scmp.eq.s32.totalorder %s28, 0
      %p196 = por %p194, %p195
      %p197 = scmp.ne.s32.totalorder %s185, %s186
      %p198 = scmp.eq.s32.totalorder %s29, 1
      %p199 = por %p197, %p198
      %p201 = scmp.ne.s32.totalorder %s186, %s200
      %p202 = scmp.eq.s32.totalorder %s29, 0
      %p203 = por %p201, %p202
      %s205 = sadd.s32 %s204, 1
      %p208 = scmp.eq.s32.totalorder %s23, 1
      %p209 = scmp.ne.s32.totalorder %s204, %s206
      %p210 = scmp.eq.s32.totalorder %s23, 0
      %p211 = por %p209, %p210
      %p212 = scmp.ne.s32.totalorder %s204, %s206
      %p213 = scmp.eq.s32.totalorder %s28, 1
      %p214 = por %p212, %p213
      %p215 = scmp.ne.s32.totalorder %s206, %s207
      %p216 = scmp.eq.s32.totalorder %s28, 0
      %p217 = por %p215, %p216
      %p218 = scmp.ne.s32.totalorder %s206, %s207
      %p219 = scmp.eq.s32.totalorder %s29, 1
      %p220 = por %p218, %p219
      %p222 = scmp.ne.s32.totalorder %s207, %s221
      %p223 = scmp.eq.s32.totalorder %s29, 0
      %p224 = por %p222, %p223
      %s225 = ssub.s32 %s23, %s30
      %p226 = scmp.eq.s32.totalorder %s225, 0
      %s228 = sadd.s32 %s227, 1
      %s229 = scalar_select %p226, %s227, %s228
      %p232 = pneg %p226
      %p233 = scmp.eq.s32.totalorder %s23, 1
      %p234 = por %p232, %p233
      %p235 = scmp.ne.s32.totalorder %s227, %s230
      %p236 = scmp.eq.s32.totalorder %s23, 0
      %p237 = por %p235, %p236
      %p238 = scmp.ne.s32.totalorder %s227, %s230
      %p239 = scmp.eq.s32.totalorder %s28, 1
      %p240 = por %p238, %p239
      %p241 = scmp.ne.s32.totalorder %s230, %s231
      %p242 = scmp.eq.s32.totalorder %s28, 0
      %p243 = por %p241, %p242
      %p244 = scmp.ne.s32.totalorder %s230, %s231
      %p245 = scmp.eq.s32.totalorder %s29, 1
      %p246 = por %p244, %p245
      %p248 = scmp.ne.s32.totalorder %s231, %s247
      %p249 = scmp.eq.s32.totalorder %s29, 0
      %p250 = por %p248, %p249
      %p251 = scmp.le.s32.totalorder 1, %s23
      %p252 = scmp.lt.s32.totalorder %s23, 3
      %p253 = pnand %p251, %p252
      %p254 = pneg %p253
      // Predicated region
      $region9: #{tpu_custom_call.1} parent=5 // pred_check
        _
      $region10: #{tpu_custom_call.1} parent=5 // pred_check_branch
        %256 = sbr.rel (%p253) target = $region12
      $region11: #{tpu_custom_call.1} parent=5 // pred_region
        %s257 = ssub.s32 %s23, 1
        // Predicated region
        $region13: #{tpu_custom_call.1} parent=11 // pred_check
          %p258 = pneg %p70
        $region14: #{tpu_custom_call.1} parent=11 // pred_check_branch
          %260 = sbr.rel (%p258) target = $region16
        $region15: #{tpu_custom_call.1} parent=11 // pred_region
          %s262 = ssub.s32 2048, 2048
          %263 = vsyncadd [#allocation6], %s262
          %s264 = sshll.u32 [#allocation5], 4
          %s265 = int_to_ptr.vmem [resolvable:$true] %s264
          %270 = dma.hbm_to_vmem [thread:$0]  %s1, 2048, %s265, [#allocation6], 128, 128, 8
        $region16: #{tpu_custom_call.1} parent=11 // pred_fallthru
          _
        // Predicated region
        $region17: #{tpu_custom_call.1} parent=11 // pred_check
          %p271 = pneg %p91
        $region18: #{tpu_custom_call.1} parent=11 // pred_check_branch
          %273 = sbr.rel (%p271) target = $region20
        $region19: #{tpu_custom_call.1} parent=11 // pred_region
          _
        $region20: #{tpu_custom_call.1} parent=11 // pred_fallthru
          _
        // Predicated region
        $region21: #{tpu_custom_call.1} parent=11 // pred_check
          %p274 = pneg %p112
        $region22: #{tpu_custom_call.1} parent=11 // pred_check_branch
          %276 = sbr.rel (%p274) target = $region24
        $region23: #{tpu_custom_call.1} parent=11 // pred_region
          %s278 = ssub.s32 2048, 2048
          %279 = vsyncadd [#allocation6], %s278
          %s280 = sshll.u32 [#allocation7], 4
          %s281 = int_to_ptr.vmem [resolvable:$true] %s280
          %286 = dma.hbm_to_vmem [thread:$0]  %s3, 2048, %s281, [#allocation6], 128, 128, 8
        $region24: #{tpu_custom_call.1} parent=11 // pred_fallthru
          _
        // Predicated region
        $region25: #{tpu_custom_call.1} parent=11 // pred_check
          %p287 = pneg %p133
        $region26: #{tpu_custom_call.1} parent=11 // pred_check_branch
          %289 = sbr.rel (%p287) target = $region28
        $region27: #{tpu_custom_call.1} parent=11 // pred_region
          _
        $region28: #{tpu_custom_call.1} parent=11 // pred_fallthru
          _
        // Predicated region
        $region29: #{tpu_custom_call.1} parent=11 // pred_check
          %p290 = pneg %p154
        $region30: #{tpu_custom_call.1} parent=11 // pred_check_branch
          %292 = sbr.rel (%p290) target = $region32
        $region31: #{tpu_custom_call.1} parent=11 // pred_region
          %s294 = ssub.s32 2048, 2048
          %295 = vsyncadd [#allocation9], %s294
          %s296 = sshll.u32 [#allocation8], 4
          %s297 = int_to_ptr.vmem [resolvable:$true] %s296
          %302 = dma.hbm_to_vmem [thread:$0]  %s5, 2048, %s297, [#allocation9], 128, 128, 8
        $region32: #{tpu_custom_call.1} parent=11 // pred_fallthru
          _
        // Predicated region
        $region33: #{tpu_custom_call.1} parent=11 // pred_check
          %p303 = pneg %p175
        $region34: #{tpu_custom_call.1} parent=11 // pred_check_branch
          %305 = sbr.rel (%p303) target = $region36
        $region35: #{tpu_custom_call.1} parent=11 // pred_region
          _
        $region36: #{tpu_custom_call.1} parent=11 // pred_fallthru
          _
        // Predicated region
        $region37: #{tpu_custom_call.1} parent=11 // pred_check
          %p306 = pneg %p196
        $region38: #{tpu_custom_call.1} parent=11 // pred_check_branch
          %308 = sbr.rel (%p306) target = $region40
        $region39: #{tpu_custom_call.1} parent=11 // pred_region
          %s310 = ssub.s32 2048, 2048
          %311 = vsyncadd [#allocation9], %s310
          %s312 = sshll.u32 [#allocation10], 4
          %s313 = int_to_ptr.vmem [resolvable:$true] %s312
          %318 = dma.hbm_to_vmem [thread:$0]  %s7, 2048, %s313, [#allocation9], 128, 128, 8
        $region40: #{tpu_custom_call.1} parent=11 // pred_fallthru
          _
        // Predicated region
        $region41: #{tpu_custom_call.1} parent=11 // pred_check
          %p319 = pneg %p217
        $region42: #{tpu_custom_call.1} parent=11 // pred_check_branch
          %321 = sbr.rel (%p319) target = $region44
        $region43: #{tpu_custom_call.1} parent=11 // pred_region
          _
        $region44: #{tpu_custom_call.1} parent=11 // pred_fallthru
          _
      $region12: #{tpu_custom_call.1} parent=5 // pred_fallthru
        _
      %p322 = scmp.lt.s32.totalorder %s23, 2
      // Predicated region
      $region45: #{tpu_custom_call.1} parent=5 // pred_check
        %p323 = pneg %p322
      $region46: #{tpu_custom_call.1} parent=5 // pred_check_branch
        %325 = sbr.rel (%p323) target = $region48
      $region47: #{tpu_custom_call.1} parent=5 // pred_region
        // Predicated region
        $region49: #{tpu_custom_call.1} parent=47 // pred_check
          %p326 = pneg %p43
        $region50: #{tpu_custom_call.1} parent=47 // pred_check_branch
          %328 = sbr.rel (%p326) target = $region52
        $region51: #{tpu_custom_call.1} parent=47 // pred_region
          %s329 = sand.u32 %s33, 1
          %s330 = scalar_lea.sflag [#allocation3], %s329
          %s331 = sand.u32 %s33, 1
          %s332 = smul.addr %s331, 128
          %s333 = scalar_lea.vmem [#allocation2], %s332
          %s334 = smul.u32 16, %s23
          %s336 = ssub.s32 2048, 2048
          %337 = vsyncadd %s330, %s336
          %s338 = smul.addr %s334, 128
          %s339 = scalar_lea.hbm %s0, %s338
          %s340 = sshll.u32 %s333, 4
          %s341 = int_to_ptr.vmem [resolvable:$true] %s340
          %346 = dma.hbm_to_vmem [thread:$0]  %s339, 2048, %s341, %s330, 128, 128, 8
        $region52: #{tpu_custom_call.1} parent=47 // pred_fallthru
          _
      $region48: #{tpu_custom_call.1} parent=5 // pred_fallthru
        _
      %p347 = scmp.le.s32.totalorder 1, %s23
      %p348 = scmp.lt.s32.totalorder %s23, 3
      %p349 = pnand %p347, %p348
      %p350 = pneg %p349
      // Predicated region
      $region53: #{tpu_custom_call.1} parent=5 // pred_check
        _
      $region54: #{tpu_custom_call.1} parent=5 // pred_check_branch
        %352 = sbr.rel (%p349) target = $region56
      $region55: #{tpu_custom_call.1} parent=5 // pred_region
        %s353 = ssub.s32 %s23, 1
        %s354 = sand.u32 %s36, 1
        %s355 = scalar_lea.sflag [#allocation3], %s354
        %s356 = sand.u32 %s36, 1
        %s357 = smul.addr %s356, 128
        %s358 = scalar_lea.vmem [#allocation2], %s357
        // Predicated region
        $region57: #{tpu_custom_call.1} parent=55 // pred_check
          %p359 = pneg %p49
        $region58: #{tpu_custom_call.1} parent=55 // pred_check_branch
          %361 = sbr.rel (%p359) target = $region60
        $region59: #{tpu_custom_call.1} parent=55 // pred_region
          %362 = dma.done %s355, 2048
        $region60: #{tpu_custom_call.1} parent=55 // pred_fallthru
          _
        // Predicated region
        $region61: #{tpu_custom_call.1} parent=55 // pred_check
          %p363 = pneg %p70
        $region62: #{tpu_custom_call.1} parent=55 // pred_check_branch
          %365 = sbr.rel (%p363) target = $region64
        $region63: #{tpu_custom_call.1} parent=55 // pred_region
          %366 = dma.done [#allocation6], 2048
        $region64: #{tpu_custom_call.1} parent=55 // pred_fallthru
          _
        // Predicated region
        $region65: #{tpu_custom_call.1} parent=55 // pred_check
          %p367 = pneg %p112
        $region66: #{tpu_custom_call.1} parent=55 // pred_check_branch
          %369 = sbr.rel (%p367) target = $region68
        $region67: #{tpu_custom_call.1} parent=55 // pred_region
          %370 = dma.done [#allocation6], 2048
        $region68: #{tpu_custom_call.1} parent=55 // pred_fallthru
          _
        // Predicated region
        $region69: #{tpu_custom_call.1} parent=55 // pred_check
          %p371 = pneg %p154
        $region70: #{tpu_custom_call.1} parent=55 // pred_check_branch
          %373 = sbr.rel (%p371) target = $region72
        $region71: #{tpu_custom_call.1} parent=55 // pred_region
          %374 = dma.done [#allocation9], 2048
        $region72: #{tpu_custom_call.1} parent=55 // pred_fallthru
          _
        // Predicated region
        $region73: #{tpu_custom_call.1} parent=55 // pred_check
          %p375 = pneg %p196
        $region74: #{tpu_custom_call.1} parent=55 // pred_check_branch
          %377 = sbr.rel (%p375) target = $region76
        $region75: #{tpu_custom_call.1} parent=55 // pred_region
          %378 = dma.done [#allocation9], 2048
        $region76: #{tpu_custom_call.1} parent=55 // pred_fallthru
          _
        %s379 = sand.u32 %s36, 1
        %s380 = scalar_lea.sflag [#allocation3], %s379
        %s381 = sand.u32 %s36, 1
        %s382 = smul.addr %s381, 128
        %s383 = scalar_lea.vmem [#allocation2], %s382
        %p384 = pneg %p49
        %p385 = pneg %p46
        %p386 = pneg %p70
        %p387 = pneg %p67
        %p388 = pneg %p91
        %p389 = pneg %p88
        %p390 = pneg %p112
        %p391 = pneg %p109
        %p392 = pneg %p133
        %p393 = pneg %p130
        %p394 = pneg %p154
        %p395 = pneg %p151
        %p396 = pneg %p175
        %p397 = pneg %p172
        %p398 = pneg %p196
        %p399 = pneg %p193
        %p400 = pneg %p217
        %p401 = pneg %p214
        %p402 = pneg %p243
        %p403 = pneg %p240
        %s404 = sand.u32 %s230, 1
        %s405 = scalar_lea.sflag [#allocation4], %s404
        %s406 = sand.u32 %s230, 1
        %s407 = smul.addr %s406, 128
        %s408 = scalar_lea.vmem [#allocation11], %s407
        %s409 = smul.u32 16, %s28
        %s410 = smul.u32 16, %s28
        %v411 = vld [vmem:[%s358] sm:$0xff]
        %v412 = vld [vmem:[%s358 + $0x8] sm:$0xff]
        %v413 = vld [vmem:[%s358 + $0x10] sm:$0xff]
        %v414 = vld [vmem:[%s358 + $0x18] sm:$0xff]
        %v415 = vld [vmem:[%s358 + $0x20] sm:$0xff]
        %v416 = vld [vmem:[%s358 + $0x28] sm:$0xff]
        %v417 = vld [vmem:[%s358 + $0x30] sm:$0xff]
        %v418 = vld [vmem:[%s358 + $0x38] sm:$0xff]
        %v419 = vld [vmem:[%s358 + $0x40] sm:$0xff]
        %v420 = vld [vmem:[%s358 + $0x48] sm:$0xff]
        %v421 = vld [vmem:[%s358 + $0x50] sm:$0xff]
        %v422 = vld [vmem:[%s358 + $0x58] sm:$0xff]
        %v423 = vld [vmem:[%s358 + $0x60] sm:$0xff]
        %v424 = vld [vmem:[%s358 + $0x68] sm:$0xff]
        %v425 = vld [vmem:[%s358 + $0x70] sm:$0xff]
        %v426 = vld [vmem:[%s358 + $0x78] sm:$0xff]
        %v427 = vld [vmem:[#allocation5] sm:$0xff]
        %v428 = vld [vmem:[#allocation5 + $0x8] sm:$0xff]
        %v429 = vld [vmem:[#allocation5 + $0x10] sm:$0xff]
        %v430 = vld [vmem:[#allocation5 + $0x18] sm:$0xff]
        %v431 = vld [vmem:[#allocation5 + $0x20] sm:$0xff]
        %v432 = vld [vmem:[#allocation5 + $0x28] sm:$0xff]
        %v433 = vld [vmem:[#allocation5 + $0x30] sm:$0xff]
        %v434 = vld [vmem:[#allocation5 + $0x38] sm:$0xff]
        %v435 = vld [vmem:[#allocation5 + $0x40] sm:$0xff]
        %v436 = vld [vmem:[#allocation5 + $0x48] sm:$0xff]
        %v437 = vld [vmem:[#allocation5 + $0x50] sm:$0xff]
        %v438 = vld [vmem:[#allocation5 + $0x58] sm:$0xff]
        %v439 = vld [vmem:[#allocation5 + $0x60] sm:$0xff]
        %v440 = vld [vmem:[#allocation5 + $0x68] sm:$0xff]
        %v441 = vld [vmem:[#allocation5 + $0x70] sm:$0xff]
        %v442 = vld [vmem:[#allocation5 + $0x78] sm:$0xff]
        %v443 = vld [vmem:[%s2] sm:$0x1]
        %v445 = vlaneseq
        %v446 = vshrl.u32 %v445, 7
        %v447 = vsub.s32 0, %v446
        %v448 = vrot.slane %v443, %v447
        %450 = vmatprep.subr.mxu0 0.0
        %451 = vmatpush1.msra.mxu0 %v427
        %452 = vmatprep.subr.mxu0 0.0
        %453 = vmatpush1.msra.mxu0 %v428
        %454 = vmatprep.subr.mxu0 0.0
        %455 = vmatpush1.msra.mxu0 %v429
        %456 = vmatprep.subr.mxu0 0.0
        %457 = vmatpush1.msra.mxu0 %v430
        %458 = vmatprep.subr.mxu0 0.0
        %459 = vmatpush1.msra.mxu0 %v431
        %460 = vmatprep.subr.mxu0 0.0
        %461 = vmatpush1.msra.mxu0 %v432
        %462 = vmatprep.subr.mxu0 0.0
        %463 = vmatpush1.msra.mxu0 %v433
        %464 = vmatprep.subr.mxu0 0.0
        %465 = vmatpush1.msra.mxu0 %v434
        %466 = vmatprep.subr.mxu0 0.0
        %467 = vmatpush1.msra.mxu0 %v435
        %468 = vmatprep.subr.mxu0 0.0
        %469 = vmatpush1.msra.mxu0 %v436
        %470 = vmatprep.subr.mxu0 0.0
        %471 = vmatpush1.msra.mxu0 %v437
        %472 = vmatprep.subr.mxu0 0.0
        %473 = vmatpush1.msra.mxu0 %v438
        %474 = vmatprep.subr.mxu0 0.0
        %475 = vmatpush1.msra.mxu0 %v439
        %476 = vmatprep.subr.mxu0 0.0
        %477 = vmatpush1.msra.mxu0 %v440
        %478 = vmatprep.subr.mxu0 0.0
        %479 = vmatpush1.msra.mxu0 %v441
        %480 = vmatprep.subr.mxu0 0.0
        %481 = vmatpush1.msra.mxu0 %v442
        %482 = vmatprep.subr.mxu0 0.0
        %483 = vmatpush1.msra.mxu0 0.0
        %484 = vmatprep.subr.mxu0 0.0
        %485 = vmatpush1.msra.mxu0 0.0
        %486 = vmatprep.subr.mxu0 0.0
        %487 = vmatpush1.msra.mxu0 0.0
        %488 = vmatprep.subr.mxu0 0.0
        %489 = vmatpush1.msra.mxu0 0.0
        %490 = vmatprep.subr.mxu0 0.0
        %491 = vmatpush1.msra.mxu0 0.0
        %492 = vmatprep.subr.mxu0 0.0
        %493 = vmatpush1.msra.mxu0 0.0
        %494 = vmatprep.subr.mxu0 0.0
        %495 = vmatpush1.msra.mxu0 0.0
        %496 = vmatprep.subr.mxu0 0.0
        %497 = vmatpush1.msra.mxu0 0.0
        %498 = vmatprep.subr.mxu0 0.0
        %499 = vmatpush1.msra.mxu0 0.0
        %500 = vmatprep.subr.mxu0 0.0
        %501 = vmatpush1.msra.mxu0 0.0
        %502 = vmatprep.subr.mxu0 0.0
        %503 = vmatpush1.msra.mxu0 0.0
        %504 = vmatprep.subr.mxu0 0.0
        %505 = vmatpush1.msra.mxu0 0.0
        %506 = vmatprep.subr.mxu0 0.0
        %507 = vmatpush1.msra.mxu0 0.0
        %508 = vmatprep.subr.mxu0 0.0
        %509 = vmatpush1.msra.mxu0 0.0
        %510 = vmatprep.subr.mxu0 0.0
        %511 = vmatpush1.msra.mxu0 0.0
        %512 = vmatprep.subr.mxu0 0.0
        %513 = vmatpush1.msra.mxu0 0.0
        %514 = vmatprep.mubr.f32.mxu0 0.0
        %515 = vmatmul.mubr.f32.gmra.mrb[0].mxu0 %v411
        %v516 = vpop.f32.mrb[0].mxu0
        %v517 = vadd.f32 %v448, %v516
        %v518 = vpop.f32.mrb[0].mxu0
        %519 = vmatprep.mubr.f32.mxu0 0.0
        %520 = vmatmul.mubr.f32.gmra.mrb[0].mxu0 %v412
        %v521 = vpop.f32.mrb[0].mxu0
        %v522 = vadd.f32 %v448, %v521
        %v523 = vpop.f32.mrb[0].mxu0
        %524 = vmatprep.mubr.f32.mxu0 0.0
        %525 = vmatmul.mubr.f32.gmra.mrb[0].mxu0 %v413
        %v526 = vpop.f32.mrb[0].mxu0
        %v527 = vadd.f32 %v448, %v526
        %v528 = vpop.f32.mrb[0].mxu0
        %529 = vmatprep.mubr.f32.mxu0 0.0
        %530 = vmatmul.mubr.f32.gmra.mrb[0].mxu0 %v414
        %v531 = vpop.f32.mrb[0].mxu0
        %v532 = vadd.f32 %v448, %v531
        %v533 = vpop.f32.mrb[0].mxu0
        %534 = vmatprep.mubr.f32.mxu0 0.0
        %535 = vmatmul.mubr.f32.gmra.mrb[0].mxu0 %v415
        %v536 = vpop.f32.mrb[0].mxu0
        %v537 = vadd.f32 %v448, %v536
        %v538 = vpop.f32.mrb[0].mxu0
        %539 = vmatprep.mubr.f32.mxu0 0.0
        %540 = vmatmul.mubr.f32.gmra.mrb[0].mxu0 %v416
        %v541 = vpop.f32.mrb[0].mxu0
        %v542 = vadd.f32 %v448, %v541
        %v543 = vpop.f32.mrb[0].mxu0
        %544 = vmatprep.mubr.f32.mxu0 0.0
        %545 = vmatmul.mubr.f32.gmra.mrb[0].mxu0 %v417
        %v546 = vpop.f32.mrb[0].mxu0
        %v547 = vadd.f32 %v448, %v546
        %v548 = vpop.f32.mrb[0].mxu0
        %549 = vmatprep.mubr.f32.mxu0 0.0
        %550 = vmatmul.mubr.f32.gmra.mrb[0].mxu0 %v418
        %v551 = vpop.f32.mrb[0].mxu0
        %v552 = vadd.f32 %v448, %v551
        %v553 = vpop.f32.mrb[0].mxu0
        %554 = vmatprep.mubr.f32.mxu0 0.0
        %555 = vmatmul.mubr.f32.gmra.mrb[0].mxu0 %v419
        %v556 = vpop.f32.mrb[0].mxu0
        %v557 = vadd.f32 %v448, %v556
        %v558 = vpop.f32.mrb[0].mxu0
        %559 = vmatprep.mubr.f32.mxu0 0.0
        %560 = vmatmul.mubr.f32.gmra.mrb[0].mxu0 %v420
        %v561 = vpop.f32.mrb[0].mxu0
        %v562 = vadd.f32 %v448, %v561
        %v563 = vpop.f32.mrb[0].mxu0
        %564 = vmatprep.mubr.f32.mxu0 0.0
        %565 = vmatmul.mubr.f32.gmra.mrb[0].mxu0 %v421
        %v566 = vpop.f32.mrb[0].mxu0
        %v567 = vadd.f32 %v448, %v566
        %v568 = vpop.f32.mrb[0].mxu0
        %569 = vmatprep.mubr.f32.mxu0 0.0
        %570 = vmatmul.mubr.f32.gmra.mrb[0].mxu0 %v422
        %v571 = vpop.f32.mrb[0].mxu0
        %v572 = vadd.f32 %v448, %v571
        %v573 = vpop.f32.mrb[0].mxu0
        %574 = vmatprep.mubr.f32.mxu0 0.0
        %575 = vmatmul.mubr.f32.gmra.mrb[0].mxu0 %v423
        %v576 = vpop.f32.mrb[0].mxu0
        %v577 = vadd.f32 %v448, %v576
        %v578 = vpop.f32.mrb[0].mxu0
        %579 = vmatprep.mubr.f32.mxu0 0.0
        %580 = vmatmul.mubr.f32.gmra.mrb[0].mxu0 %v424
        %v581 = vpop.f32.mrb[0].mxu0
        %v582 = vadd.f32 %v448, %v581
        %v583 = vpop.f32.mrb[0].mxu0
        %584 = vmatprep.mubr.f32.mxu0 0.0
        %585 = vmatmul.mubr.f32.gmra.mrb[0].mxu0 %v425
        %v586 = vpop.f32.mrb[0].mxu0
        %v587 = vadd.f32 %v448, %v586
        %v588 = vpop.f32.mrb[0].mxu0
        %589 = vmatprep.mubr.f32.mxu0 0.0
        %590 = vmatmul.mubr.f32.gmra.mrb[0].mxu0 %v426
        %v591 = vpop.f32.mrb[0].mxu0
        %v592 = vadd.f32 %v448, %v591
        %v593 = vpop.f32.mrb[0].mxu0
        %594 = vdwg.mxu0
        %v595 = vtanh.pop %v517
        %v596 = vtanh.pop %v522
        %v597 = vtanh.pop %v527
        %v598 = vtanh.pop %v532
        %v599 = vtanh.pop %v537
        %v600 = vtanh.pop %v542
        %v601 = vtanh.pop %v547
        %v602 = vtanh.pop %v552
        %v603 = vtanh.pop %v557
        %v604 = vtanh.pop %v562
        %v605 = vtanh.pop %v567
        %v606 = vtanh.pop %v572
        %v607 = vtanh.pop %v577
        %v608 = vtanh.pop %v582
        %v609 = vtanh.pop %v587
        %v610 = vtanh.pop %v592
        %v611 = vld [vmem:[#allocation7] sm:$0xff]
        %v612 = vld [vmem:[#allocation7 + $0x8] sm:$0xff]
        %v613 = vld [vmem:[#allocation7 + $0x10] sm:$0xff]
        %v614 = vld [vmem:[#allocation7 + $0x18] sm:$0xff]
        %v615 = vld [vmem:[#allocation7 + $0x20] sm:$0xff]
        %v616 = vld [vmem:[#allocation7 + $0x28] sm:$0xff]
        %v617 = vld [vmem:[#allocation7 + $0x30] sm:$0xff]
        %v618 = vld [vmem:[#allocation7 + $0x38] sm:$0xff]
        %v619 = vld [vmem:[#allocation7 + $0x40] sm:$0xff]
        %v620 = vld [vmem:[#allocation7 + $0x48] sm:$0xff]
        %v621 = vld [vmem:[#allocation7 + $0x50] sm:$0xff]
        %v622 = vld [vmem:[#allocation7 + $0x58] sm:$0xff]
        %v623 = vld [vmem:[#allocation7 + $0x60] sm:$0xff]
        %v624 = vld [vmem:[#allocation7 + $0x68] sm:$0xff]
        %v625 = vld [vmem:[#allocation7 + $0x70] sm:$0xff]
        %v626 = vld [vmem:[#allocation7 + $0x78] sm:$0xff]
        %v627 = vld [vmem:[%s4] sm:$0x1]
        %v629 = vlaneseq
        %v630 = vshrl.u32 %v629, 7
        %v631 = vsub.s32 0, %v630
        %v632 = vrot.slane %v627, %v631
        %634 = vmatprep.subr.mxu0 0.0
        %635 = vmatpush1.msra.mxu0 %v611
        %636 = vmatprep.subr.mxu0 0.0
        %637 = vmatpush1.msra.mxu0 %v612
        %638 = vmatprep.subr.mxu0 0.0
        %639 = vmatpush1.msra.mxu0 %v613
        %640 = vmatprep.subr.mxu0 0.0
        %641 = vmatpush1.msra.mxu0 %v614
        %642 = vmatprep.subr.mxu0 0.0
        %643 = vmatpush1.msra.mxu0 %v615
        %644 = vmatprep.subr.mxu0 0.0
        %645 = vmatpush1.msra.mxu0 %v616
        %646 = vmatprep.subr.mxu0 0.0
        %647 = vmatpush1.msra.mxu0 %v617
        %648 = vmatprep.subr.mxu0 0.0
        %649 = vmatpush1.msra.mxu0 %v618
        %650 = vmatprep.subr.mxu0 0.0
        %651 = vmatpush1.msra.mxu0 %v619
        %652 = vmatprep.subr.mxu0 0.0
        %653 = vmatpush1.msra.mxu0 %v620
        %654 = vmatprep.subr.mxu0 0.0
        %655 = vmatpush1.msra.mxu0 %v621
        %656 = vmatprep.subr.mxu0 0.0
        %657 = vmatpush1.msra.mxu0 %v622
        %658 = vmatprep.subr.mxu0 0.0
        %659 = vmatpush1.msra.mxu0 %v623
        %660 = vmatprep.subr.mxu0 0.0
        %661 = vmatpush1.msra.mxu0 %v624
        %662 = vmatprep.subr.mxu0 0.0
        %663 = vmatpush1.msra.mxu0 %v625
        %664 = vmatprep.subr.mxu0 0.0
        %665 = vmatpush1.msra.mxu0 %v626
        %666 = vmatprep.subr.mxu0 0.0
        %667 = vmatpush1.msra.mxu0 0.0
        %668 = vmatprep.subr.mxu0 0.0
        %669 = vmatpush1.msra.mxu0 0.0
        %670 = vmatprep.subr.mxu0 0.0
        %671 = vmatpush1.msra.mxu0 0.0
        %672 = vmatprep.subr.mxu0 0.0
        %673 = vmatpush1.msra.mxu0 0.0
        %674 = vmatprep.subr.mxu0 0.0
        %675 = vmatpush1.msra.mxu0 0.0
        %676 = vmatprep.subr.mxu0 0.0
        %677 = vmatpush1.msra.mxu0 0.0
        %678 = vmatprep.subr.mxu0 0.0
        %679 = vmatpush1.msra.mxu0 0.0
        %680 = vmatprep.subr.mxu0 0.0
        %681 = vmatpush1.msra.mxu0 0.0
        %682 = vmatprep.subr.mxu0 0.0
        %683 = vmatpush1.msra.mxu0 0.0
        %684 = vmatprep.subr.mxu0 0.0
        %685 = vmatpush1.msra.mxu0 0.0
        %686 = vmatprep.subr.mxu0 0.0
        %687 = vmatpush1.msra.mxu0 0.0
        %688 = vmatprep.subr.mxu0 0.0
        %689 = vmatpush1.msra.mxu0 0.0
        %690 = vmatprep.subr.mxu0 0.0
        %691 = vmatpush1.msra.mxu0 0.0
        %692 = vmatprep.subr.mxu0 0.0
        %693 = vmatpush1.msra.mxu0 0.0
        %694 = vmatprep.subr.mxu0 0.0
        %695 = vmatpush1.msra.mxu0 0.0
        %696 = vmatprep.subr.mxu0 0.0
        %697 = vmatpush1.msra.mxu0 0.0
        %698 = vmatprep.mubr.f32.mxu0 0.0
        %699 = vmatmul.mubr.f32.gmra.mrb[0].mxu0 %v595
        %v700 = vpop.f32.mrb[0].mxu0
        %v701 = vadd.f32 %v632, %v700
        %v702 = vpop.f32.mrb[0].mxu0
        %703 = vmatprep.mubr.f32.mxu0 0.0
        %704 = vmatmul.mubr.f32.gmra.mrb[0].mxu0 %v596
        %v705 = vpop.f32.mrb[0].mxu0
        %v706 = vadd.f32 %v632, %v705
        %v707 = vpop.f32.mrb[0].mxu0
        %708 = vmatprep.mubr.f32.mxu0 0.0
        %709 = vmatmul.mubr.f32.gmra.mrb[0].mxu0 %v597
        %v710 = vpop.f32.mrb[0].mxu0
        %v711 = vadd.f32 %v632, %v710
        %v712 = vpop.f32.mrb[0].mxu0
        %713 = vmatprep.mubr.f32.mxu0 0.0
        %714 = vmatmul.mubr.f32.gmra.mrb[0].mxu0 %v598
        %v715 = vpop.f32.mrb[0].mxu0
        %v716 = vadd.f32 %v632, %v715
        %v717 = vpop.f32.mrb[0].mxu0
        %718 = vmatprep.mubr.f32.mxu0 0.0
        %719 = vmatmul.mubr.f32.gmra.mrb[0].mxu0 %v599
        %v720 = vpop.f32.mrb[0].mxu0
        %v721 = vadd.f32 %v632, %v720
        %v722 = vpop.f32.mrb[0].mxu0
        %723 = vmatprep.mubr.f32.mxu0 0.0
        %724 = vmatmul.mubr.f32.gmra.mrb[0].mxu0 %v600
        %v725 = vpop.f32.mrb[0].mxu0
        %v726 = vadd.f32 %v632, %v725
        %v727 = vpop.f32.mrb[0].mxu0
        %728 = vmatprep.mubr.f32.mxu0 0.0
        %729 = vmatmul.mubr.f32.gmra.mrb[0].mxu0 %v601
        %v730 = vpop.f32.mrb[0].mxu0
        %v731 = vadd.f32 %v632, %v730
        %v732 = vpop.f32.mrb[0].mxu0
        %733 = vmatprep.mubr.f32.mxu0 0.0
        %734 = vmatmul.mubr.f32.gmra.mrb[0].mxu0 %v602
        %v735 = vpop.f32.mrb[0].mxu0
        %v736 = vadd.f32 %v632, %v735
        %v737 = vpop.f32.mrb[0].mxu0
        %738 = vmatprep.mubr.f32.mxu0 0.0
        %739 = vmatmul.mubr.f32.gmra.mrb[0].mxu0 %v603
        %v740 = vpop.f32.mrb[0].mxu0
        %v741 = vadd.f32 %v632, %v740
        %v742 = vpop.f32.mrb[0].mxu0
        %743 = vmatprep.mubr.f32.mxu0 0.0
        %744 = vmatmul.mubr.f32.gmra.mrb[0].mxu0 %v604
        %v745 = vpop.f32.mrb[0].mxu0
        %v746 = vadd.f32 %v632, %v745
        %v747 = vpop.f32.mrb[0].mxu0
        %748 = vmatprep.mubr.f32.mxu0 0.0
        %749 = vmatmul.mubr.f32.gmra.mrb[0].mxu0 %v605
        %v750 = vpop.f32.mrb[0].mxu0
        %v751 = vadd.f32 %v632, %v750
        %v752 = vpop.f32.mrb[0].mxu0
        %753 = vmatprep.mubr.f32.mxu0 0.0
        %754 = vmatmul.mubr.f32.gmra.mrb[0].mxu0 %v606
        %v755 = vpop.f32.mrb[0].mxu0
        %v756 = vadd.f32 %v632, %v755
        %v757 = vpop.f32.mrb[0].mxu0
        %758 = vmatprep.mubr.f32.mxu0 0.0
        %759 = vmatmul.mubr.f32.gmra.mrb[0].mxu0 %v607
        %v760 = vpop.f32.mrb[0].mxu0
        %v761 = vadd.f32 %v632, %v760
        %v762 = vpop.f32.mrb[0].mxu0
        %763 = vmatprep.mubr.f32.mxu0 0.0
        %764 = vmatmul.mubr.f32.gmra.mrb[0].mxu0 %v608
        %v765 = vpop.f32.mrb[0].mxu0
        %v766 = vadd.f32 %v632, %v765
        %v767 = vpop.f32.mrb[0].mxu0
        %768 = vmatprep.mubr.f32.mxu0 0.0
        %769 = vmatmul.mubr.f32.gmra.mrb[0].mxu0 %v609
        %v770 = vpop.f32.mrb[0].mxu0
        %v771 = vadd.f32 %v632, %v770
        %v772 = vpop.f32.mrb[0].mxu0
        %773 = vmatprep.mubr.f32.mxu0 0.0
        %774 = vmatmul.mubr.f32.gmra.mrb[0].mxu0 %v610
        %v775 = vpop.f32.mrb[0].mxu0
        %v776 = vadd.f32 %v632, %v775
        %v777 = vpop.f32.mrb[0].mxu0
        %778 = vdwg.mxu0
        %v779 = vtanh.pop %v701
        %v780 = vtanh.pop %v706
        %v781 = vtanh.pop %v711
        %v782 = vtanh.pop %v716
        %v783 = vtanh.pop %v721
        %v784 = vtanh.pop %v726
        %v785 = vtanh.pop %v731
        %v786 = vtanh.pop %v736
        %v787 = vtanh.pop %v741
        %v788 = vtanh.pop %v746
        %v789 = vtanh.pop %v751
        %v790 = vtanh.pop %v756
        %v791 = vtanh.pop %v761
        %v792 = vtanh.pop %v766
        %v793 = vtanh.pop %v771
        %v794 = vtanh.pop %v776
        %v795 = vld [vmem:[#allocation8] sm:$0xff]
        %v796 = vld [vmem:[#allocation8 + $0x8] sm:$0xff]
        %v797 = vld [vmem:[#allocation8 + $0x10] sm:$0xff]
        %v798 = vld [vmem:[#allocation8 + $0x18] sm:$0xff]
        %v799 = vld [vmem:[#allocation8 + $0x20] sm:$0xff]
        %v800 = vld [vmem:[#allocation8 + $0x28] sm:$0xff]
        %v801 = vld [vmem:[#allocation8 + $0x30] sm:$0xff]
        %v802 = vld [vmem:[#allocation8 + $0x38] sm:$0xff]
        %v803 = vld [vmem:[#allocation8 + $0x40] sm:$0xff]
        %v804 = vld [vmem:[#allocation8 + $0x48] sm:$0xff]
        %v805 = vld [vmem:[#allocation8 + $0x50] sm:$0xff]
        %v806 = vld [vmem:[#allocation8 + $0x58] sm:$0xff]
        %v807 = vld [vmem:[#allocation8 + $0x60] sm:$0xff]
        %v808 = vld [vmem:[#allocation8 + $0x68] sm:$0xff]
        %v809 = vld [vmem:[#allocation8 + $0x70] sm:$0xff]
        %v810 = vld [vmem:[#allocation8 + $0x78] sm:$0xff]
        %v811 = vld [vmem:[%s6] sm:$0x1]
        %v813 = vlaneseq
        %v814 = vshrl.u32 %v813, 7
        %v815 = vsub.s32 0, %v814
        %v816 = vrot.slane %v811, %v815
        %818 = vmatprep.subr.mxu0 0.0
        %819 = vmatpush1.msra.mxu0 %v795
        %820 = vmatprep.subr.mxu0 0.0
        %821 = vmatpush1.msra.mxu0 %v796
        %822 = vmatprep.subr.mxu0 0.0
        %823 = vmatpush1.msra.mxu0 %v797
        %824 = vmatprep.subr.mxu0 0.0
        %825 = vmatpush1.msra.mxu0 %v798
        %826 = vmatprep.subr.mxu0 0.0
        %827 = vmatpush1.msra.mxu0 %v799
        %828 = vmatprep.subr.mxu0 0.0
        %829 = vmatpush1.msra.mxu0 %v800
        %830 = vmatprep.subr.mxu0 0.0
        %831 = vmatpush1.msra.mxu0 %v801
        %832 = vmatprep.subr.mxu0 0.0
        %833 = vmatpush1.msra.mxu0 %v802
        %834 = vmatprep.subr.mxu0 0.0
        %835 = vmatpush1.msra.mxu0 %v803
        %836 = vmatprep.subr.mxu0 0.0
        %837 = vmatpush1.msra.mxu0 %v804
        %838 = vmatprep.subr.mxu0 0.0
        %839 = vmatpush1.msra.mxu0 %v805
        %840 = vmatprep.subr.mxu0 0.0
        %841 = vmatpush1.msra.mxu0 %v806
        %842 = vmatprep.subr.mxu0 0.0
        %843 = vmatpush1.msra.mxu0 %v807
        %844 = vmatprep.subr.mxu0 0.0
        %845 = vmatpush1.msra.mxu0 %v808
        %846 = vmatprep.subr.mxu0 0.0
        %847 = vmatpush1.msra.mxu0 %v809
        %848 = vmatprep.subr.mxu0 0.0
        %849 = vmatpush1.msra.mxu0 %v810
        %850 = vmatprep.subr.mxu0 0.0
        %851 = vmatpush1.msra.mxu0 0.0
        %852 = vmatprep.subr.mxu0 0.0
        %853 = vmatpush1.msra.mxu0 0.0
        %854 = vmatprep.subr.mxu0 0.0
        %855 = vmatpush1.msra.mxu0 0.0
        %856 = vmatprep.subr.mxu0 0.0
        %857 = vmatpush1.msra.mxu0 0.0
        %858 = vmatprep.subr.mxu0 0.0
        %859 = vmatpush1.msra.mxu0 0.0
        %860 = vmatprep.subr.mxu0 0.0
        %861 = vmatpush1.msra.mxu0 0.0
        %862 = vmatprep.subr.mxu0 0.0
        %863 = vmatpush1.msra.mxu0 0.0
        %864 = vmatprep.subr.mxu0 0.0
        %865 = vmatpush1.msra.mxu0 0.0
        %866 = vmatprep.subr.mxu0 0.0
        %867 = vmatpush1.msra.mxu0 0.0
        %868 = vmatprep.subr.mxu0 0.0
        %869 = vmatpush1.msra.mxu0 0.0
        %870 = vmatprep.subr.mxu0 0.0
        %871 = vmatpush1.msra.mxu0 0.0
        %872 = vmatprep.subr.mxu0 0.0
        %873 = vmatpush1.msra.mxu0 0.0
        %874 = vmatprep.subr.mxu0 0.0
        %875 = vmatpush1.msra.mxu0 0.0
        %876 = vmatprep.subr.mxu0 0.0
        %877 = vmatpush1.msra.mxu0 0.0
        %878 = vmatprep.subr.mxu0 0.0
        %879 = vmatpush1.msra.mxu0 0.0
        %880 = vmatprep.subr.mxu0 0.0
        %881 = vmatpush1.msra.mxu0 0.0
        %882 = vmatprep.mubr.f32.mxu0 0.0
        %883 = vmatmul.mubr.f32.gmra.mrb[0].mxu0 %v779
        %v884 = vpop.f32.mrb[0].mxu0
        %v885 = vadd.f32 %v816, %v884
        %v886 = vpop.f32.mrb[0].mxu0
        %887 = vmatprep.mubr.f32.mxu0 0.0
        %888 = vmatmul.mubr.f32.gmra.mrb[0].mxu0 %v780
        %v889 = vpop.f32.mrb[0].mxu0
        %v890 = vadd.f32 %v816, %v889
        %v891 = vpop.f32.mrb[0].mxu0
        %892 = vmatprep.mubr.f32.mxu0 0.0
        %893 = vmatmul.mubr.f32.gmra.mrb[0].mxu0 %v781
        %v894 = vpop.f32.mrb[0].mxu0
        %v895 = vadd.f32 %v816, %v894
        %v896 = vpop.f32.mrb[0].mxu0
        %897 = vmatprep.mubr.f32.mxu0 0.0
        %898 = vmatmul.mubr.f32.gmra.mrb[0].mxu0 %v782
        %v899 = vpop.f32.mrb[0].mxu0
        %v900 = vadd.f32 %v816, %v899
        %v901 = vpop.f32.mrb[0].mxu0
        %902 = vmatprep.mubr.f32.mxu0 0.0
        %903 = vmatmul.mubr.f32.gmra.mrb[0].mxu0 %v783
        %v904 = vpop.f32.mrb[0].mxu0
        %v905 = vadd.f32 %v816, %v904
        %v906 = vpop.f32.mrb[0].mxu0
        %907 = vmatprep.mubr.f32.mxu0 0.0
        %908 = vmatmul.mubr.f32.gmra.mrb[0].mxu0 %v784
        %v909 = vpop.f32.mrb[0].mxu0
        %v910 = vadd.f32 %v816, %v909
        %v911 = vpop.f32.mrb[0].mxu0
        %912 = vmatprep.mubr.f32.mxu0 0.0
        %913 = vmatmul.mubr.f32.gmra.mrb[0].mxu0 %v785
        %v914 = vpop.f32.mrb[0].mxu0
        %v915 = vadd.f32 %v816, %v914
        %v916 = vpop.f32.mrb[0].mxu0
        %917 = vmatprep.mubr.f32.mxu0 0.0
        %918 = vmatmul.mubr.f32.gmra.mrb[0].mxu0 %v786
        %v919 = vpop.f32.mrb[0].mxu0
        %v920 = vadd.f32 %v816, %v919
        %v921 = vpop.f32.mrb[0].mxu0
        %922 = vmatprep.mubr.f32.mxu0 0.0
        %923 = vmatmul.mubr.f32.gmra.mrb[0].mxu0 %v787
        %v924 = vpop.f32.mrb[0].mxu0
        %v925 = vadd.f32 %v816, %v924
        %v926 = vpop.f32.mrb[0].mxu0
        %927 = vmatprep.mubr.f32.mxu0 0.0
        %928 = vmatmul.mubr.f32.gmra.mrb[0].mxu0 %v788
        %v929 = vpop.f32.mrb[0].mxu0
        %v930 = vadd.f32 %v816, %v929
        %v931 = vpop.f32.mrb[0].mxu0
        %932 = vmatprep.mubr.f32.mxu0 0.0
        %933 = vmatmul.mubr.f32.gmra.mrb[0].mxu0 %v789
        %v934 = vpop.f32.mrb[0].mxu0
        %v935 = vadd.f32 %v816, %v934
        %v936 = vpop.f32.mrb[0].mxu0
        %937 = vmatprep.mubr.f32.mxu0 0.0
        %938 = vmatmul.mubr.f32.gmra.mrb[0].mxu0 %v790
        %v939 = vpop.f32.mrb[0].mxu0
        %v940 = vadd.f32 %v816, %v939
        %v941 = vpop.f32.mrb[0].mxu0
        %942 = vmatprep.mubr.f32.mxu0 0.0
        %943 = vmatmul.mubr.f32.gmra.mrb[0].mxu0 %v791
        %v944 = vpop.f32.mrb[0].mxu0
        %v945 = vadd.f32 %v816, %v944
        %v946 = vpop.f32.mrb[0].mxu0
        %947 = vmatprep.mubr.f32.mxu0 0.0
        %948 = vmatmul.mubr.f32.gmra.mrb[0].mxu0 %v792
        %v949 = vpop.f32.mrb[0].mxu0
        %v950 = vadd.f32 %v816, %v949
        %v951 = vpop.f32.mrb[0].mxu0
        %952 = vmatprep.mubr.f32.mxu0 0.0
        %953 = vmatmul.mubr.f32.gmra.mrb[0].mxu0 %v793
        %v954 = vpop.f32.mrb[0].mxu0
        %v955 = vadd.f32 %v816, %v954
        %v956 = vpop.f32.mrb[0].mxu0
        %957 = vmatprep.mubr.f32.mxu0 0.0
        %958 = vmatmul.mubr.f32.gmra.mrb[0].mxu0 %v794
        %v959 = vpop.f32.mrb[0].mxu0
        %v960 = vadd.f32 %v816, %v959
        %v961 = vpop.f32.mrb[0].mxu0
        %962 = vdwg.mxu0
        %v963 = vtanh.pop %v885
        %v964 = vtanh.pop %v890
        %v965 = vtanh.pop %v895
        %v966 = vtanh.pop %v900
        %v967 = vtanh.pop %v905
        %v968 = vtanh.pop %v910
        %v969 = vtanh.pop %v915
        %v970 = vtanh.pop %v920
        %v971 = vtanh.pop %v925
        %v972 = vtanh.pop %v930
        %v973 = vtanh.pop %v935
        %v974 = vtanh.pop %v940
        %v975 = vtanh.pop %v945
        %v976 = vtanh.pop %v950
        %v977 = vtanh.pop %v955
        %v978 = vtanh.pop %v960
        %v979 = vld [vmem:[#allocation10] sm:$0xff]
        %v980 = vld [vmem:[#allocation10 + $0x8] sm:$0xff]
        %v981 = vld [vmem:[#allocation10 + $0x10] sm:$0xff]
        %v982 = vld [vmem:[#allocation10 + $0x18] sm:$0xff]
        %v983 = vld [vmem:[#allocation10 + $0x20] sm:$0xff]
        %v984 = vld [vmem:[#allocation10 + $0x28] sm:$0xff]
        %v985 = vld [vmem:[#allocation10 + $0x30] sm:$0xff]
        %v986 = vld [vmem:[#allocation10 + $0x38] sm:$0xff]
        %v987 = vld [vmem:[#allocation10 + $0x40] sm:$0xff]
        %v988 = vld [vmem:[#allocation10 + $0x48] sm:$0xff]
        %v989 = vld [vmem:[#allocation10 + $0x50] sm:$0xff]
        %v990 = vld [vmem:[#allocation10 + $0x58] sm:$0xff]
        %v991 = vld [vmem:[#allocation10 + $0x60] sm:$0xff]
        %v992 = vld [vmem:[#allocation10 + $0x68] sm:$0xff]
        %v993 = vld [vmem:[#allocation10 + $0x70] sm:$0xff]
        %v994 = vld [vmem:[#allocation10 + $0x78] sm:$0xff]
        %v995 = vld [vmem:[%s8] sm:$0x1]
        %v997 = vlaneseq
        %v998 = vshrl.u32 %v997, 7
        %v999 = vsub.s32 0, %v998
        %v1000 = vrot.slane %v995, %v999
        %1002 = vmatprep.subr.mxu0 0.0
        %1003 = vmatpush1.msra.mxu0 %v979
        %1004 = vmatprep.subr.mxu0 0.0
        %1005 = vmatpush1.msra.mxu0 %v980
        %1006 = vmatprep.subr.mxu0 0.0
        %1007 = vmatpush1.msra.mxu0 %v981
        %1008 = vmatprep.subr.mxu0 0.0
        %1009 = vmatpush1.msra.mxu0 %v982
        %1010 = vmatprep.subr.mxu0 0.0
        %1011 = vmatpush1.msra.mxu0 %v983
        %1012 = vmatprep.subr.mxu0 0.0
        %1013 = vmatpush1.msra.mxu0 %v984
        %1014 = vmatprep.subr.mxu0 0.0
        %1015 = vmatpush1.msra.mxu0 %v985
        %1016 = vmatprep.subr.mxu0 0.0
        %1017 = vmatpush1.msra.mxu0 %v986
        %1018 = vmatprep.subr.mxu0 0.0
        %1019 = vmatpush1.msra.mxu0 %v987
        %1020 = vmatprep.subr.mxu0 0.0
        %1021 = vmatpush1.msra.mxu0 %v988
        %1022 = vmatprep.subr.mxu0 0.0
        %1023 = vmatpush1.msra.mxu0 %v989
        %1024 = vmatprep.subr.mxu0 0.0
        %1025 = vmatpush1.msra.mxu0 %v990
        %1026 = vmatprep.subr.mxu0 0.0
        %1027 = vmatpush1.msra.mxu0 %v991
        %1028 = vmatprep.subr.mxu0 0.0
        %1029 = vmatpush1.msra.mxu0 %v992
        %1030 = vmatprep.subr.mxu0 0.0
        %1031 = vmatpush1.msra.mxu0 %v993
        %1032 = vmatprep.subr.mxu0 0.0
        %1033 = vmatpush1.msra.mxu0 %v994
        %1034 = vmatprep.subr.mxu0 0.0
        %1035 = vmatpush1.msra.mxu0 0.0
        %1036 = vmatprep.subr.mxu0 0.0
        %1037 = vmatpush1.msra.mxu0 0.0
        %1038 = vmatprep.subr.mxu0 0.0
        %1039 = vmatpush1.msra.mxu0 0.0
        %1040 = vmatprep.subr.mxu0 0.0
        %1041 = vmatpush1.msra.mxu0 0.0
        %1042 = vmatprep.subr.mxu0 0.0
        %1043 = vmatpush1.msra.mxu0 0.0
        %1044 = vmatprep.subr.mxu0 0.0
        %1045 = vmatpush1.msra.mxu0 0.0
        %1046 = vmatprep.subr.mxu0 0.0
        %1047 = vmatpush1.msra.mxu0 0.0
        %1048 = vmatprep.subr.mxu0 0.0
        %1049 = vmatpush1.msra.mxu0 0.0
        %1050 = vmatprep.subr.mxu0 0.0
        %1051 = vmatpush1.msra.mxu0 0.0
        %1052 = vmatprep.subr.mxu0 0.0
        %1053 = vmatpush1.msra.mxu0 0.0
        %1054 = vmatprep.subr.mxu0 0.0
        %1055 = vmatpush1.msra.mxu0 0.0
        %1056 = vmatprep.subr.mxu0 0.0
        %1057 = vmatpush1.msra.mxu0 0.0
        %1058 = vmatprep.subr.mxu0 0.0
        %1059 = vmatpush1.msra.mxu0 0.0
        %1060 = vmatprep.subr.mxu0 0.0
        %1061 = vmatpush1.msra.mxu0 0.0
        %1062 = vmatprep.subr.mxu0 0.0
        %1063 = vmatpush1.msra.mxu0 0.0
        %1064 = vmatprep.subr.mxu0 0.0
        %1065 = vmatpush1.msra.mxu0 0.0
        %1066 = vmatprep.mubr.f32.mxu0 0.0
        %1067 = vmatmul.mubr.f32.gmra.mrb[0].mxu0 %v963
        %v1068 = vpop.f32.mrb[0].mxu0
        %v1069 = vadd.f32 %v1000, %v1068
        %v1070 = vpop.f32.mrb[0].mxu0
        %1071 = vmatprep.mubr.f32.mxu0 0.0
        %1072 = vmatmul.mubr.f32.gmra.mrb[0].mxu0 %v964
        %v1073 = vpop.f32.mrb[0].mxu0
        %v1074 = vadd.f32 %v1000, %v1073
        %v1075 = vpop.f32.mrb[0].mxu0
        %1076 = vmatprep.mubr.f32.mxu0 0.0
        %1077 = vmatmul.mubr.f32.gmra.mrb[0].mxu0 %v965
        %v1078 = vpop.f32.mrb[0].mxu0
        %v1079 = vadd.f32 %v1000, %v1078
        %v1080 = vpop.f32.mrb[0].mxu0
        %1081 = vmatprep.mubr.f32.mxu0 0.0
        %1082 = vmatmul.mubr.f32.gmra.mrb[0].mxu0 %v966
        %v1083 = vpop.f32.mrb[0].mxu0
        %v1084 = vadd.f32 %v1000, %v1083
        %v1085 = vpop.f32.mrb[0].mxu0
        %1086 = vmatprep.mubr.f32.mxu0 0.0
        %1087 = vmatmul.mubr.f32.gmra.mrb[0].mxu0 %v967
        %v1088 = vpop.f32.mrb[0].mxu0
        %v1089 = vadd.f32 %v1000, %v1088
        %v1090 = vpop.f32.mrb[0].mxu0
        %1091 = vmatprep.mubr.f32.mxu0 0.0
        %1092 = vmatmul.mubr.f32.gmra.mrb[0].mxu0 %v968
        %v1093 = vpop.f32.mrb[0].mxu0
        %v1094 = vadd.f32 %v1000, %v1093
        %v1095 = vpop.f32.mrb[0].mxu0
        %1096 = vmatprep.mubr.f32.mxu0 0.0
        %1097 = vmatmul.mubr.f32.gmra.mrb[0].mxu0 %v969
        %v1098 = vpop.f32.mrb[0].mxu0
        %v1099 = vadd.f32 %v1000, %v1098
        %v1100 = vpop.f32.mrb[0].mxu0
        %1101 = vmatprep.mubr.f32.mxu0 0.0
        %1102 = vmatmul.mubr.f32.gmra.mrb[0].mxu0 %v970
        %v1103 = vpop.f32.mrb[0].mxu0
        %v1104 = vadd.f32 %v1000, %v1103
        %v1105 = vpop.f32.mrb[0].mxu0
        %1106 = vmatprep.mubr.f32.mxu0 0.0
        %1107 = vmatmul.mubr.f32.gmra.mrb[0].mxu0 %v971
        %v1108 = vpop.f32.mrb[0].mxu0
        %v1109 = vadd.f32 %v1000, %v1108
        %v1110 = vpop.f32.mrb[0].mxu0
        %1111 = vmatprep.mubr.f32.mxu0 0.0
        %1112 = vmatmul.mubr.f32.gmra.mrb[0].mxu0 %v972
        %v1113 = vpop.f32.mrb[0].mxu0
        %v1114 = vadd.f32 %v1000, %v1113
        %v1115 = vpop.f32.mrb[0].mxu0
        %1116 = vmatprep.mubr.f32.mxu0 0.0
        %1117 = vmatmul.mubr.f32.gmra.mrb[0].mxu0 %v973
        %v1118 = vpop.f32.mrb[0].mxu0
        %v1119 = vadd.f32 %v1000, %v1118
        %v1120 = vpop.f32.mrb[0].mxu0
        %1121 = vmatprep.mubr.f32.mxu0 0.0
        %1122 = vmatmul.mubr.f32.gmra.mrb[0].mxu0 %v974
        %v1123 = vpop.f32.mrb[0].mxu0
        %v1124 = vadd.f32 %v1000, %v1123
        %v1125 = vpop.f32.mrb[0].mxu0
        %1126 = vmatprep.mubr.f32.mxu0 0.0
        %1127 = vmatmul.mubr.f32.gmra.mrb[0].mxu0 %v975
        %v1128 = vpop.f32.mrb[0].mxu0
        %v1129 = vadd.f32 %v1000, %v1128
        %v1130 = vpop.f32.mrb[0].mxu0
        %1131 = vmatprep.mubr.f32.mxu0 0.0
        %1132 = vmatmul.mubr.f32.gmra.mrb[0].mxu0 %v976
        %v1133 = vpop.f32.mrb[0].mxu0
        %v1134 = vadd.f32 %v1000, %v1133
        %v1135 = vpop.f32.mrb[0].mxu0
        %1136 = vmatprep.mubr.f32.mxu0 0.0
        %1137 = vmatmul.mubr.f32.gmra.mrb[0].mxu0 %v977
        %v1138 = vpop.f32.mrb[0].mxu0
        %v1139 = vadd.f32 %v1000, %v1138
        %v1140 = vpop.f32.mrb[0].mxu0
        %1141 = vmatprep.mubr.f32.mxu0 0.0
        %1142 = vmatmul.mubr.f32.gmra.mrb[0].mxu0 %v978
        %v1143 = vpop.f32.mrb[0].mxu0
        %v1144 = vadd.f32 %v1000, %v1143
        %v1145 = vpop.f32.mrb[0].mxu0
        %1146 = vdwg.mxu0
        %1147 = vst [vmem:[%s408] sm:$0xff] %v1069
        %1148 = vst [vmem:[%s408 + $0x8] sm:$0xff] %v1074
        %1149 = vst [vmem:[%s408 + $0x10] sm:$0xff] %v1079
        %1150 = vst [vmem:[%s408 + $0x18] sm:$0xff] %v1084
        %1151 = vst [vmem:[%s408 + $0x20] sm:$0xff] %v1089
        %1152 = vst [vmem:[%s408 + $0x28] sm:$0xff] %v1094
        %1153 = vst [vmem:[%s408 + $0x30] sm:$0xff] %v1099
        %1154 = vst [vmem:[%s408 + $0x38] sm:$0xff] %v1104
        %1155 = vst [vmem:[%s408 + $0x40] sm:$0xff] %v1109
        %1156 = vst [vmem:[%s408 + $0x48] sm:$0xff] %v1114
        %1157 = vst [vmem:[%s408 + $0x50] sm:$0xff] %v1119
        %1158 = vst [vmem:[%s408 + $0x58] sm:$0xff] %v1124
        %1159 = vst [vmem:[%s408 + $0x60] sm:$0xff] %v1129
        %1160 = vst [vmem:[%s408 + $0x68] sm:$0xff] %v1134
        %1161 = vst [vmem:[%s408 + $0x70] sm:$0xff] %v1139
        %1162 = vst [vmem:[%s408 + $0x78] sm:$0xff] %v1144
        %s1163 = sand.u32 %s230, 1
        %s1164 = scalar_lea.sflag [#allocation4], %s1163
        %s1165 = sand.u32 %s230, 1
        %s1166 = smul.addr %s1165, 128
        %s1167 = scalar_lea.vmem [#allocation11], %s1166
        // Predicated region
        $region77: #{tpu_custom_call.1} parent=55 // pred_check
          %p1168 = pneg %p240
        $region78: #{tpu_custom_call.1} parent=55 // pred_check_branch
          %1170 = sbr.rel (%p1168) target = $region80
        $region79: #{tpu_custom_call.1} parent=55 // pred_region
          %s1171 = smul.u32 16, %s28
          %s1173 = ssub.s32 2048, 2048
          %1174 = vsyncadd %s1164, %s1173
          %s1175 = smul.addr %s1171, 128
          %s1176 = scalar_lea.hbm %s9, %s1175
          %s1177 = sshll.u32 %s1167, 4
          %s1178 = int_to_ptr.vmem [resolvable:$true] %s1177
          %1183 = dma.vmem_to_hbm [thread:$0]  %s1178, 2048, %s1176, %s1164, 128, 128, 8
        $region80: #{tpu_custom_call.1} parent=55 // pred_fallthru
          _
      $region56: #{tpu_custom_call.1} parent=5 // pred_fallthru
        _
      %p1184 = scmp.le.s32.totalorder 2, %s23
      // Predicated region
      $region81: #{tpu_custom_call.1} parent=5 // pred_check
        %p1185 = pneg %p1184
      $region82: #{tpu_custom_call.1} parent=5 // pred_check_branch
        %1187 = sbr.rel (%p1185) target = $region84
      $region83: #{tpu_custom_call.1} parent=5 // pred_region
        %s1188 = ssub.s32 %s23, 2
        // Predicated region
        $region85: #{tpu_custom_call.1} parent=83 // pred_check
          %p1189 = pneg %p246
        $region86: #{tpu_custom_call.1} parent=83 // pred_check_branch
          %1191 = sbr.rel (%p1189) target = $region88
        $region87: #{tpu_custom_call.1} parent=83 // pred_region
          %s1192 = sand.u32 %s231, 1
          %s1193 = scalar_lea.sflag [#allocation4], %s1192
          %s1194 = sand.u32 %s231, 1
          %s1195 = smul.addr %s1194, 128
          %s1196 = scalar_lea.vmem [#allocation11], %s1195
          %1197 = dma.done %s1193, 2048
        $region88: #{tpu_custom_call.1} parent=83 // pred_fallthru
          _
      $region84: #{tpu_custom_call.1} parent=5 // pred_fallthru
        _
    $region6: #{tpu_custom_call.1} parent=1 // loop_footer
      %s27 = sadd.s32 1, %s23
    $region7: #{tpu_custom_call.1} parent=1 // loop_footer_branch
      %22 = sbr.rel target = $region3
    $region8: #{tpu_custom_call.1} parent=1 // loop_exit
      _
    %1198 = vsyncpa [#allocation3], 1
    %s1199 = scalar_lea.sflag [#allocation3], 1
    %1200 = vsyncpa %s1199, 1
    %1201 = vsyncpa [#allocation6], 1
    %1202 = vsyncpa [#allocation9], 1
    %1203 = vsyncpa [#allocation4], 1
    %s1204 = scalar_lea.sflag [#allocation4], 1
    %1205 = vsyncpa %s1204, 1

</llo_original>
